<compile_context>
chip_gen: v7x
topology: tpu7x:2x2x1
jax: 0.10.0
libtpu: 0.0.40
codegen_flags: <defaults>
</compile_context>

<pallas_src>
import numpy as np
import jax
import jax.numpy as jnp
from jax.experimental import pallas as pl
from jax.experimental.pallas import tpu as pltpu


# ---------------------------------------------------------------------------
# Fused kernel: one channel block per grid step.
#   rows  : (b, w) for real slabs, (b, v) for half-spectrum slabs (v padded to Fp)
#   lanes : (c_local, h) / (c_local, u)  -- CB*H wide (multiple of 128)
# ---------------------------------------------------------------------------
def _gfb_kernel(x_ref, wr_ref, wi_ref, kbf_ref, ka_ref, kia_ref,
                kibc_ref, kibs_ref, o_ref):
    f32 = jnp.float32
    bf16 = jnp.bfloat16
    cbh = x_ref.shape[-1]        # CB * H   (lane width of this channel block)
    bfp = wr_ref.shape[0]        # B * Fp   (padded half-spectrum row count)

    x = x_ref[...]                                                     # (B*W, cbh) bf16

    # (1) forward rfft along W (row transform), real/imag stacked on rows:
    #     [Tr ; Ti] = KBF @ x
    t = jnp.dot(kbf_ref[...], x, preferred_element_type=f32)           # (2*bfp, cbh)

    # (2) forward fft along H (lane transform), real/imag of the constant stacked
    #     on lanes:  P = [Tr;Ti] @ [KAr | KAi]
    p = jnp.dot(t.astype(bf16), ka_ref[...], preferred_element_type=f32)  # (2*bfp, 2*cbh)
    xr = p[:bfp, :cbh] - p[bfp:, cbh:]
    xi = p[:bfp, cbh:] + p[bfp:, :cbh]

    # (3) learned complex filter (kept in f32 on the VPU; lane-dense)
    wr = wr_ref[...]
    wi = wi_ref[...]
    yr = (xr * wr - xi * wi).astype(bf16)
    yi = (xr * wi + xi * wr).astype(bf16)

    # (4) inverse fft along H (lane transform): Q = Y @ [KIAr | KIAi]
    qr = jnp.dot(yr, kia_ref[...], preferred_element_type=f32)         # (bfp, 2*cbh)
    qi = jnp.dot(yi, kia_ref[...], preferred_element_type=f32)
    zr = (qr[:, :cbh] - qi[:, cbh:]).astype(bf16)
    zi = (qr[:, cbh:] + qi[:, :cbh]).astype(bf16)

    # (5) inverse rfft along W (row transform); Hermitian fold (c_v weights, DC /
    #     Nyquist imag parts dropped) is baked into the constants.
    y = (jnp.dot(kibc_ref[...], zr, preferred_element_type=f32)
         + jnp.dot(kibs_ref[...], zi, preferred_element_type=f32))     # (B*W, cbh)
    o_ref[...] = y.astype(o_ref.dtype)


# ---------------------------------------------------------------------------
# Host-side constant DFT operators (ortho normalization, matches norm='ortho').
# Built in numpy so they are baked as jit constants.
# ---------------------------------------------------------------------------
def _dft_constants(B, CB, H, W, Fp):
    Fw = W // 2 + 1
    # forward rfft over W:  Br/Bi[v, w] = exp(-2*pi*i*v*w/W)/sqrt(W)
    ang_vw = 2.0 * np.pi * np.outer(np.arange(Fw), np.arange(W)) / W        # [v, w]
    br = np.cos(ang_vw) / np.sqrt(W)
    bi = -np.sin(ang_vw) / np.sqrt(W)
    # inverse rfft over W with Hermitian extension folded in (c_0 = c_Nyq = 1, else 2):
    cv = np.full((Fw,), 2.0)
    cv[0] = 1.0
    if W % 2 == 0:
        cv[-1] = 1.0
    ibc = cv[None, :] * np.cos(ang_vw.T) / np.sqrt(W)                       # [w, v]
    ibs = -cv[None, :] * np.sin(ang_vw.T) / np.sqrt(W)

    # forward / inverse DFT over H as RIGHT-multiply blocks (symmetric angle matrix)
    ang_hu = 2.0 * np.pi * np.outer(np.arange(H), np.arange(H)) / H         # [h, u]
    a_r = np.cos(ang_hu) / np.sqrt(H)        # fwd:  exp(-i..) real
    a_i = -np.sin(ang_hu) / np.sqrt(H)       # fwd:  exp(-i..) imag
    ia_r = np.cos(ang_hu) / np.sqrt(H)       # inv:  exp(+i..) real
    ia_i = np.sin(ang_hu) / np.sqrt(H)       # inv:  exp(+i..) imag

    # zero-pad the half-spectrum axis Fw -> Fp (padded rows/cols carry nothing)
    brp = np.zeros((Fp, W)); brp[:Fw] = br
    bip = np.zeros((Fp, W)); bip[:Fw] = bi
    ibcp = np.zeros((W, Fp)); ibcp[:, :Fw] = ibc
    ibsp = np.zeros((W, Fp)); ibsp[:, :Fw] = ibs

    eye_b = np.eye(B)
    # row transforms, batch folded block-diagonally; real/imag stacked on rows
    kbf = np.concatenate([np.kron(eye_b, brp), np.kron(eye_b, bip)], axis=0)  # (2*B*Fp, B*W)
    kibc = np.kron(eye_b, ibcp)                                               # (B*W, B*Fp)
    kibs = np.kron(eye_b, ibsp)                                               # (B*W, B*Fp)

    eye_c = np.eye(CB)
    # lane transforms, block-diagonal over the channels of ONE channel block;
    # real/imag stacked on lanes
    ka = np.concatenate([np.kron(eye_c, a_r), np.kron(eye_c, a_i)], axis=1)    # (CB*H, 2*CB*H)
    kia = np.concatenate([np.kron(eye_c, ia_r), np.kron(eye_c, ia_i)], axis=1)  # (CB*H, 2*CB*H)
    return kbf, ka, kia, kibc, kibs


def _pick_channel_block(C, H):
    # smallest channel block whose lane width CB*H is a multiple of 128:
    # lane-dense blocks, tiny constants, constants independent of C.
    for cb in range(1, C + 1):
        if C % cb == 0 and (cb * H) % 128 == 0:
            return cb
    return C


# ---------------------------------------------------------------------------
# Wrapper
# ---------------------------------------------------------------------------
def global_fourier_block(x, complex_weight):
    """x: (B, C, H, W) f32; complex_weight: (C, H, W//2+1, 2) f32."""
    B, C, H, W = x.shape
    Fw = W // 2 + 1
    # TODO(synk): F.interpolate bilinear-resize branches are not implemented.
    if complex_weight.shape != (C, H, Fw, 2):
        raise NotImplementedError("bilinear weight-resize branch not implemented")
    if W % 2 != 0:
        raise NotImplementedError("odd W (output-resize branch) not implemented")

    Fp = ((Fw + 7) // 8) * 8          # pad half-spectrum rows to a sublane multiple
    CB = _pick_channel_block(C, H)    # channels per grid step
    CBH = CB * H
    nblk = C // CB

    kbf, ka, kia, kibc, kibs = (jnp.asarray(m, jnp.bfloat16)
                                for m in _dft_constants(B, CB, H, W, Fp))

    # learned filter -> rows (b, v), lanes (c, u); pad v in [Fw, Fp) with zeros
    def _prep_weight(wp):
        wp = jnp.transpose(wp, (2, 0, 1)).reshape(Fw, C * H)   # [v, c*H + u]
        wp = jnp.pad(wp, ((0, Fp - Fw), (0, 0)))
        return jnp.tile(wp, (B, 1)).astype(jnp.float32)        # (B*Fp, C*H)

    wgt_r = _prep_weight(complex_weight[..., 0])
    wgt_i = _prep_weight(complex_weight[..., 1])

    # x -> (B*W, C*H) slab: rows (b, w), lanes (c, h); bf16 matmul operand
    x_slab = jnp.transpose(x, (0, 3, 1, 2)).reshape(B * W, C * H).astype(jnp.bfloat16)

    blk = lambda j: (0, j)
    full = lambda j: (0, 0)
    out = pl.pallas_call(
        _gfb_kernel,
        out_shape=jax.ShapeDtypeStruct((B * W, C * H), jnp.float32),
        grid_spec=pltpu.PrefetchScalarGridSpec(
            num_scalar_prefetch=0,
            grid=(nblk,),
            in_specs=[
                pl.BlockSpec((B * W, CBH), blk),            # x slab (bf16)
                pl.BlockSpec((B * Fp, CBH), blk),           # filter real (f32)
                pl.BlockSpec((B * Fp, CBH), blk),           # filter imag (f32)
                pl.BlockSpec((2 * B * Fp, B * W), full),    # fwd rfft_W (row op)
                pl.BlockSpec((CBH, 2 * CBH), full),         # fwd fft_H  (lane op)
                pl.BlockSpec((CBH, 2 * CBH), full),         # inv fft_H  (lane op)
                pl.BlockSpec((B * W, B * Fp), full),        # inv rfft_W (cos part)
                pl.BlockSpec((B * W, B * Fp), full),        # inv rfft_W (sin part)
            ],
            out_specs=pl.BlockSpec((B * W, CBH), blk),
        ),
        compiler_params=pltpu.CompilerParams(
            dimension_semantics=("parallel",)),
    )(x_slab, wgt_r, wgt_i, kbf, ka, kia, kibc, kibs)

    # (B*W, C*H) -> (B, C, H, W)
    return jnp.transpose(out.reshape(B, W, C, H), (0, 2, 3, 1))


# ---------------------------------------------------------------------------
if __name__ == "__main__":
    B, C, H, W = 2, 32, 16, 16
    key = jax.random.PRNGKey(0)
    kx, kw = jax.random.split(key)
    x = jax.random.normal(kx, (B, C, H, W), jnp.float32)
    weight = jax.random.normal(kw, (C, H, W // 2 + 1, 2), jnp.float32) * 0.02

    fwd = jax.jit(global_fourier_block)
    out = fwd(x, weight)
    jax.block_until_ready(out)

    # Reference (same semantics as the torch module: ortho-normalized rfft2/irfft2).
    xf = jnp.fft.rfft2(x, axes=(2, 3), norm="ortho")
    wc = weight[..., 0] + 1j * weight[..., 1]
    ref = jnp.fft.irfft2(xf * wc[None], s=(H, W), axes=(2, 3), norm="ortho")

    assert out.shape == (B, C, H, W), out.shape
    assert bool(jnp.all(jnp.isfinite(out)))
    err = float(jnp.max(jnp.abs(out - ref)))
    # bf16 matmul operands with f32 accumulation: expected max-abs error ~4e-4
    assert err < 3e-3, f"max abs err vs fft reference: {err}"
    print("KERNEL_OK")
</pallas_src>

<mosaic_0001>
module attributes {stable_mosaic.version = 11 : i64} {
  func.func @_gfb_kernel(%arg0: i32, %arg1: memref<32x128xbf16, #tpu.memory_space<vmem>>, %arg2: memref<32x128xf32, #tpu.memory_space<vmem>>, %arg3: memref<32x128xf32, #tpu.memory_space<vmem>>, %arg4: memref<64x32xbf16, #tpu.memory_space<vmem>>, %arg5: memref<128x256xbf16, #tpu.memory_space<vmem>>, %arg6: memref<128x256xbf16, #tpu.memory_space<vmem>>, %arg7: memref<32x32xbf16, #tpu.memory_space<vmem>>, %arg8: memref<32x32xbf16, #tpu.memory_space<vmem>>, %arg9: memref<32x128xf32, #tpu.memory_space<vmem>>) attributes {dimension_semantics = [#tpu.dimension_semantics<parallel>], iteration_bounds = array<i64: 4>, scalar_prefetch = 0 : i64, scratch_operands = 0 : i64, tpu.core_type = #tpu.core_type<tc>, window_params = [{transform_indices = @transform_0, window_bounds = array<i64: 32, 128>}, {transform_indices = @transform_1, window_bounds = array<i64: 32, 128>}, {transform_indices = @transform_2, window_bounds = array<i64: 32, 128>}, {pipeline_mode = #tpu.pipeline_mode<synchronous>, transform_indices = @transform_3, window_bounds = array<i64: 64, 32>}, {pipeline_mode = #tpu.pipeline_mode<synchronous>, transform_indices = @transform_4, window_bounds = array<i64: 128, 256>}, {pipeline_mode = #tpu.pipeline_mode<synchronous>, transform_indices = @transform_5, window_bounds = array<i64: 128, 256>}, {pipeline_mode = #tpu.pipeline_mode<synchronous>, transform_indices = @transform_6, window_bounds = array<i64: 32, 32>}, {pipeline_mode = #tpu.pipeline_mode<synchronous>, transform_indices = @transform_7, window_bounds = array<i64: 32, 32>}, {transform_indices = @transform_8, window_bounds = array<i64: 32, 128>}]} {
    %c0 = arith.constant 0 : index
    %c0_0 = arith.constant 0 : index
    %0 = vector.load %arg1[%c0, %c0_0] : memref<32x128xbf16, #tpu.memory_space<vmem>>, vector<32x128xbf16>
    %c0_1 = arith.constant 0 : index
    %c0_2 = arith.constant 0 : index
    %1 = vector.load %arg4[%c0_1, %c0_2] : memref<64x32xbf16, #tpu.memory_space<vmem>>, vector<64x32xbf16>
    %cst = arith.constant dense<0.000000e+00> : vector<64x128xf32>
    %2 = tpu.matmul %1, %0, %cst {dimension_numbers = #tpu.dot_dimension_numbers<[1], [0], [0], [1], [0, 0, 1, 1], [], []>} : vector<64x32xbf16>, vector<32x128xbf16>, vector<64x128xf32> -> vector<64x128xf32>
    %3 = arith.truncf %2 : vector<64x128xf32> to vector<64x128xbf16>
    %c0_3 = arith.constant 0 : index
    %c0_4 = arith.constant 0 : index
    %4 = vector.load %arg5[%c0_3, %c0_4] : memref<128x256xbf16, #tpu.memory_space<vmem>>, vector<128x256xbf16>
    %cst_5 = arith.constant dense<0.000000e+00> : vector<64x256xf32>
    %5 = tpu.matmul %3, %4, %cst_5 {dimension_numbers = #tpu.dot_dimension_numbers<[1], [0], [0], [1], [0, 0, 1, 1], [], []>} : vector<64x128xbf16>, vector<128x256xbf16>, vector<64x256xf32> -> vector<64x256xf32>
    %6 = vector.extract_strided_slice %5 {offsets = [0, 0], sizes = [32, 128], strides = [1, 1]} : vector<64x256xf32> to vector<32x128xf32>
    %7 = vector.extract_strided_slice %5 {offsets = [32, 128], sizes = [32, 128], strides = [1, 1]} : vector<64x256xf32> to vector<32x128xf32>
    %8 = arith.subf %6, %7 : vector<32x128xf32>
    %9 = vector.extract_strided_slice %5 {offsets = [0, 128], sizes = [32, 128], strides = [1, 1]} : vector<64x256xf32> to vector<32x128xf32>
    %10 = vector.extract_strided_slice %5 {offsets = [32, 0], sizes = [32, 128], strides = [1, 1]} : vector<64x256xf32> to vector<32x128xf32>
    %11 = arith.addf %9, %10 : vector<32x128xf32>
    %c0_6 = arith.constant 0 : index
    %c0_7 = arith.constant 0 : index
    %12 = vector.load %arg2[%c0_6, %c0_7] : memref<32x128xf32, #tpu.memory_space<vmem>>, vector<32x128xf32>
    %c0_8 = arith.constant 0 : index
    %c0_9 = arith.constant 0 : index
    %13 = vector.load %arg3[%c0_8, %c0_9] : memref<32x128xf32, #tpu.memory_space<vmem>>, vector<32x128xf32>
    %14 = arith.mulf %8, %12 : vector<32x128xf32>
    %15 = arith.mulf %11, %13 : vector<32x128xf32>
    %16 = arith.subf %14, %15 : vector<32x128xf32>
    %17 = arith.truncf %16 : vector<32x128xf32> to vector<32x128xbf16>
    %18 = arith.mulf %8, %13 : vector<32x128xf32>
    %19 = arith.mulf %11, %12 : vector<32x128xf32>
    %20 = arith.addf %18, %19 : vector<32x128xf32>
    %21 = arith.truncf %20 : vector<32x128xf32> to vector<32x128xbf16>
    %c0_10 = arith.constant 0 : index
    %c0_11 = arith.constant 0 : index
    %22 = vector.load %arg6[%c0_10, %c0_11] : memref<128x256xbf16, #tpu.memory_space<vmem>>, vector<128x256xbf16>
    %cst_12 = arith.constant dense<0.000000e+00> : vector<32x256xf32>
    %23 = tpu.matmul %17, %22, %cst_12 {dimension_numbers = #tpu.dot_dimension_numbers<[1], [0], [0], [1], [0, 0, 1, 1], [], []>} : vector<32x128xbf16>, vector<128x256xbf16>, vector<32x256xf32> -> vector<32x256xf32>
    %c0_13 = arith.constant 0 : index
    %c0_14 = arith.constant 0 : index
    %24 = vector.load %arg6[%c0_13, %c0_14] : memref<128x256xbf16, #tpu.memory_space<vmem>>, vector<128x256xbf16>
    %cst_15 = arith.constant dense<0.000000e+00> : vector<32x256xf32>
    %25 = tpu.matmul %21, %24, %cst_15 {dimension_numbers = #tpu.dot_dimension_numbers<[1], [0], [0], [1], [0, 0, 1, 1], [], []>} : vector<32x128xbf16>, vector<128x256xbf16>, vector<32x256xf32> -> vector<32x256xf32>
    %26 = vector.extract_strided_slice %23 {offsets = [0, 0], sizes = [32, 128], strides = [1, 1]} : vector<32x256xf32> to vector<32x128xf32>
    %27 = vector.extract_strided_slice %25 {offsets = [0, 128], sizes = [32, 128], strides = [1, 1]} : vector<32x256xf32> to vector<32x128xf32>
    %28 = arith.subf %26, %27 : vector<32x128xf32>
    %29 = arith.truncf %28 : vector<32x128xf32> to vector<32x128xbf16>
    %30 = vector.extract_strided_slice %23 {offsets = [0, 128], sizes = [32, 128], strides = [1, 1]} : vector<32x256xf32> to vector<32x128xf32>
    %31 = vector.extract_strided_slice %25 {offsets = [0, 0], sizes = [32, 128], strides = [1, 1]} : vector<32x256xf32> to vector<32x128xf32>
    %32 = arith.addf %30, %31 : vector<32x128xf32>
    %33 = arith.truncf %32 : vector<32x128xf32> to vector<32x128xbf16>
    %c0_16 = arith.constant 0 : index
    %c0_17 = arith.constant 0 : index
    %34 = vector.load %arg7[%c0_16, %c0_17] : memref<32x32xbf16, #tpu.memory_space<vmem>>, vector<32x32xbf16>
    %cst_18 = arith.constant dense<0.000000e+00> : vector<32x128xf32>
    %35 = tpu.matmul %34, %29, %cst_18 {dimension_numbers = #tpu.dot_dimension_numbers<[1], [0], [0], [1], [0, 0, 1, 1], [], []>} : vector<32x32xbf16>, vector<32x128xbf16>, vector<32x128xf32> -> vector<32x128xf32>
    %c0_19 = arith.constant 0 : index
    %c0_20 = arith.constant 0 : index
    %36 = vector.load %arg8[%c0_19, %c0_20] : memref<32x32xbf16, #tpu.memory_space<vmem>>, vector<32x32xbf16>
    %cst_21 = arith.constant dense<0.000000e+00> : vector<32x128xf32>
    %37 = tpu.matmul %36, %33, %cst_21 {dimension_numbers = #tpu.dot_dimension_numbers<[1], [0], [0], [1], [0, 0, 1, 1], [], []>} : vector<32x32xbf16>, vector<32x128xbf16>, vector<32x128xf32> -> vector<32x128xf32>
    %38 = arith.addf %35, %37 : vector<32x128xf32>
    %c0_22 = arith.constant 0 : index
    %c0_23 = arith.constant 0 : index
    %39 = vector.load %arg9[%c0_22, %c0_23] : memref<32x128xf32, #tpu.memory_space<vmem>>, vector<32x128xf32>
    tpu.vector_store %arg9[%c0_22, %c0_23], %38 {strides = array<i32>} : memref<32x128xf32, #tpu.memory_space<vmem>>, vector<32x128xf32>,
    return
  }
  func.func @transform_0(%arg0: i32) -> (i32, i32) {
    %c0_i32 = arith.constant 0 : i32
    %c0_i32_0 = arith.constant 0 : i32
    return %c0_i32, %arg0 : i32, i32
  }
  func.func @transform_1(%arg0: i32) -> (i32, i32) {
    %c0_i32 = arith.constant 0 : i32
    %c0_i32_0 = arith.constant 0 : i32
    return %c0_i32, %arg0 : i32, i32
  }
  func.func @transform_2(%arg0: i32) -> (i32, i32) {
    %c0_i32 = arith.constant 0 : i32
    %c0_i32_0 = arith.constant 0 : i32
    return %c0_i32, %arg0 : i32, i32
  }
  func.func @transform_3(%arg0: i32) -> (i32, i32) {
    %c0_i32 = arith.constant 0 : i32
    %c0_i32_0 = arith.constant 0 : i32
    %c0_i32_1 = arith.constant 0 : i32
    return %c0_i32, %c0_i32_0 : i32, i32
  }
  func.func @transform_4(%arg0: i32) -> (i32, i32) {
    %c0_i32 = arith.constant 0 : i32
    %c0_i32_0 = arith.constant 0 : i32
    %c0_i32_1 = arith.constant 0 : i32
    return %c0_i32, %c0_i32_0 : i32, i32
  }
  func.func @transform_5(%arg0: i32) -> (i32, i32) {
    %c0_i32 = arith.constant 0 : i32
    %c0_i32_0 = arith.constant 0 : i32
    %c0_i32_1 = arith.constant 0 : i32
    return %c0_i32, %c0_i32_0 : i32, i32
  }
  func.func @transform_6(%arg0: i32) -> (i32, i32) {
    %c0_i32 = arith.constant 0 : i32
    %c0_i32_0 = arith.constant 0 : i32
    %c0_i32_1 = arith.constant 0 : i32
    return %c0_i32, %c0_i32_0 : i32, i32
  }
  func.func @transform_7(%arg0: i32) -> (i32, i32) {
    %c0_i32 = arith.constant 0 : i32
    %c0_i32_0 = arith.constant 0 : i32
    %c0_i32_1 = arith.constant 0 : i32
    return %c0_i32, %c0_i32_0 : i32, i32
  }
  func.func @transform_8(%arg0: i32) -> (i32, i32) {
    %c0_i32 = arith.constant 0 : i32
    %c0_i32_0 = arith.constant 0 : i32
    return %c0_i32, %arg0 : i32, i32
  }
}

</mosaic_0001>

<llo_original>
// kernel: global_fourier_block.1
$region0: #{global_fourier_block.1}
  #allocation0 [shape = 'u32[]', space=smem, size = 0x4, offset = 0x4, fixed_abs, tag = 'smem constant byte address 0x4 - core index']
  #allocation1 [shape = 'u32[144,128]{1,0:T(1,128)}', space=vmem, size = 0x12000, scoped, tag = 'internal scratch']
  %s0 = inlined_call_operand.vmem [shape: bf16[32,512], index: 0, kind: input, shape index: {}]
  %s1 = inlined_call_operand.vmem [shape: f32[32,512], index: 1, kind: input, shape index: {}]
  %s2 = inlined_call_operand.vmem [shape: f32[32,512], index: 2, kind: input, shape index: {}]
  %s3 = inlined_call_operand.vmem [shape: bf16[64,32], index: 3, kind: input, shape index: {}]
  %s4 = inlined_call_operand.vmem [shape: bf16[128,256], index: 4, kind: input, shape index: {}]
  %s5 = inlined_call_operand.vmem [shape: bf16[128,256], index: 5, kind: input, shape index: {}]
  %s6 = inlined_call_operand.vmem [shape: bf16[32,32], index: 6, kind: input, shape index: {}]
  %s7 = inlined_call_operand.vmem [shape: bf16[32,32], index: 7, kind: input, shape index: {}]
  %s8 = inlined_call_operand.vmem [shape: f32[32,512], index: 8, kind: output, shape index: {}]
  %s9 = sld [smem:[#allocation0]]
  $region216: #{global_fourier_block.1} parent=0
    _
  %s11 = ssub.s32 1, %s9
  %s12 = scalar_select 0, %s11, %s9
  $region1: #{global_fourier_block.1} parent=0
    #allocation2 [shape = 'u8[16384]{0}', space=vmem, size = 0x4000, scoped, tag = 'input window, operand 0']
    #allocation3 [shape = 'u8[32768]{0}', space=vmem, size = 0x8000, scoped, tag = 'input window, operand 1']
    #allocation4 [shape = 'u8[32768]{0}', space=vmem, size = 0x8000, scoped, tag = 'input window, operand 2']
    #allocation5 [shape = 'u8[32768]{0}', space=vmem, size = 0x8000, scoped, tag = 'output window, operand 0']
    loop: start=0, step=1, limit=6
    $region2: #{global_fourier_block.1} parent=1 // loop_pre_header
      _
    $region3: #{global_fourier_block.1} parent=1 // loop_header
      %s14 = sphi 0, %s18
      %p15 = scmp.ge.s32.totalorder %s14, 6
      %s24 = sphi 0, %s26
      %s27 = sphi 0, %s24
      %s28 = sphi 0, %s27
      %s44 = sphi 0, %s28
      %s50 = sphi 0, %s52
      %s53 = sphi 0, %s50
      %s54 = sphi 0, %s53
      %s70 = sphi 0, %s54
      %s76 = sphi 0, %s78
      %s79 = sphi 0, %s76
      %s80 = sphi 0, %s79
      %s96 = sphi 0, %s80
      %s100 = sphi 0, %s100
      %s102 = sphi 0, %s100
      %s103 = sphi 0, %s102
      %s117 = sphi 0, %s103
      %s121 = sphi 0, %s121
      %s123 = sphi 0, %s121
      %s124 = sphi 0, %s123
      %s138 = sphi 0, %s124
      %s142 = sphi 0, %s142
      %s144 = sphi 0, %s142
      %s145 = sphi 0, %s144
      %s159 = sphi 0, %s145
      %s163 = sphi 0, %s163
      %s165 = sphi 0, %s163
      %s166 = sphi 0, %s165
      %s180 = sphi 0, %s166
      %s184 = sphi 0, %s184
      %s186 = sphi 0, %s184
      %s187 = sphi 0, %s186
      %s201 = sphi 0, %s187
      %s207 = sphi 0, %s209
      %s210 = sphi 0, %s207
      %s211 = sphi 0, %s210
      %s227 = sphi 0, %s211
    $region4: #{global_fourier_block.1} parent=1 // loop_header_branch
      %17 = sbr.rel (%p15) target = $region8
    $region5: #{global_fourier_block.1} parent=1 // loop_body
      %s19 = ssub.s32 %s14, 1
      %s20 = ssub.s32 %s14, 2
      %s21 = sadd.s32 %s14, 1
      %s22 = ssub.s32 %s14, %s21
      %p23 = scmp.eq.s32.totalorder %s22, 0
      %s25 = sadd.s32 %s24, 1
      %s26 = scalar_select %p23, %s24, %s25
      %p29 = pneg %p23
      %p30 = scmp.eq.s32.totalorder %s14, 3
      %p31 = por %p29, %p30
      %p32 = scmp.ne.s32.totalorder %s24, %s27
      %p33 = scmp.eq.s32.totalorder %s14, 0
      %p34 = por %p32, %p33
      %p35 = scmp.ne.s32.totalorder %s24, %s27
      %p36 = scmp.eq.s32.totalorder %s19, 3
      %p37 = por %p35, %p36
      %p38 = scmp.ne.s32.totalorder %s27, %s28
      %p39 = scmp.eq.s32.totalorder %s19, 0
      %p40 = por %p38, %p39
      %p41 = scmp.ne.s32.totalorder %s27, %s28
      %p42 = scmp.eq.s32.totalorder %s20, 3
      %p43 = por %p41, %p42
      %p45 = scmp.ne.s32.totalorder %s28, %s44
      %p46 = scmp.eq.s32.totalorder %s20, 0
      %p47 = por %p45, %p46
      %s48 = ssub.s32 %s14, %s21
      %p49 = scmp.eq.s32.totalorder %s48, 0
      %s51 = sadd.s32 %s50, 1
      %s52 = scalar_select %p49, %s50, %s51
      %p55 = pneg %p49
      %p56 = scmp.eq.s32.totalorder %s14, 3
      %p57 = por %p55, %p56
      %p58 = scmp.ne.s32.totalorder %s50, %s53
      %p59 = scmp.eq.s32.totalorder %s14, 0
      %p60 = por %p58, %p59
      %p61 = scmp.ne.s32.totalorder %s50, %s53
      %p62 = scmp.eq.s32.totalorder %s19, 3
      %p63 = por %p61, %p62
      %p64 = scmp.ne.s32.totalorder %s53, %s54
      %p65 = scmp.eq.s32.totalorder %s19, 0
      %p66 = por %p64, %p65
      %p67 = scmp.ne.s32.totalorder %s53, %s54
      %p68 = scmp.eq.s32.totalorder %s20, 3
      %p69 = por %p67, %p68
      %p71 = scmp.ne.s32.totalorder %s54, %s70
      %p72 = scmp.eq.s32.totalorder %s20, 0
      %p73 = por %p71, %p72
      %s74 = ssub.s32 %s14, %s21
      %p75 = scmp.eq.s32.totalorder %s74, 0
      %s77 = sadd.s32 %s76, 1
      %s78 = scalar_select %p75, %s76, %s77
      %p81 = pneg %p75
      %p82 = scmp.eq.s32.totalorder %s14, 3
      %p83 = por %p81, %p82
      %p84 = scmp.ne.s32.totalorder %s76, %s79
      %p85 = scmp.eq.s32.totalorder %s14, 0
      %p86 = por %p84, %p85
      %p87 = scmp.ne.s32.totalorder %s76, %s79
      %p88 = scmp.eq.s32.totalorder %s19, 3
      %p89 = por %p87, %p88
      %p90 = scmp.ne.s32.totalorder %s79, %s80
      %p91 = scmp.eq.s32.totalorder %s19, 0
      %p92 = por %p90, %p91
      %p93 = scmp.ne.s32.totalorder %s79, %s80
      %p94 = scmp.eq.s32.totalorder %s20, 3
      %p95 = por %p93, %p94
      %p97 = scmp.ne.s32.totalorder %s80, %s96
      %p98 = scmp.eq.s32.totalorder %s20, 0
      %p99 = por %p97, %p98
      %s101 = sadd.s32 %s100, 1
      %p104 = scmp.eq.s32.totalorder %s14, 3
      %p105 = scmp.ne.s32.totalorder %s100, %s102
      %p106 = scmp.eq.s32.totalorder %s14, 0
      %p107 = por %p105, %p106
      %p108 = scmp.ne.s32.totalorder %s100, %s102
      %p109 = scmp.eq.s32.totalorder %s19, 3
      %p110 = por %p108, %p109
      %p111 = scmp.ne.s32.totalorder %s102, %s103
      %p112 = scmp.eq.s32.totalorder %s19, 0
      %p113 = por %p111, %p112
      %p114 = scmp.ne.s32.totalorder %s102, %s103
      %p115 = scmp.eq.s32.totalorder %s20, 3
      %p116 = por %p114, %p115
      %p118 = scmp.ne.s32.totalorder %s103, %s117
      %p119 = scmp.eq.s32.totalorder %s20, 0
      %p120 = por %p118, %p119
      %s122 = sadd.s32 %s121, 1
      %p125 = scmp.eq.s32.totalorder %s14, 3
      %p126 = scmp.ne.s32.totalorder %s121, %s123
      %p127 = scmp.eq.s32.totalorder %s14, 0
      %p128 = por %p126, %p127
      %p129 = scmp.ne.s32.totalorder %s121, %s123
      %p130 = scmp.eq.s32.totalorder %s19, 3
      %p131 = por %p129, %p130
      %p132 = scmp.ne.s32.totalorder %s123, %s124
      %p133 = scmp.eq.s32.totalorder %s19, 0
      %p134 = por %p132, %p133
      %p135 = scmp.ne.s32.totalorder %s123, %s124
      %p136 = scmp.eq.s32.totalorder %s20, 3
      %p137 = por %p135, %p136
      %p139 = scmp.ne.s32.totalorder %s124, %s138
      %p140 = scmp.eq.s32.totalorder %s20, 0
      %p141 = por %p139, %p140
      %s143 = sadd.s32 %s142, 1
      %p146 = scmp.eq.s32.totalorder %s14, 3
      %p147 = scmp.ne.s32.totalorder %s142, %s144
      %p148 = scmp.eq.s32.totalorder %s14, 0
      %p149 = por %p147, %p148
      %p150 = scmp.ne.s32.totalorder %s142, %s144
      %p151 = scmp.eq.s32.totalorder %s19, 3
      %p152 = por %p150, %p151
      %p153 = scmp.ne.s32.totalorder %s144, %s145
      %p154 = scmp.eq.s32.totalorder %s19, 0
      %p155 = por %p153, %p154
      %p156 = scmp.ne.s32.totalorder %s144, %s145
      %p157 = scmp.eq.s32.totalorder %s20, 3
      %p158 = por %p156, %p157
      %p160 = scmp.ne.s32.totalorder %s145, %s159
      %p161 = scmp.eq.s32.totalorder %s20, 0
      %p162 = por %p160, %p161
      %s164 = sadd.s32 %s163, 1
      %p167 = scmp.eq.s32.totalorder %s14, 3
      %p168 = scmp.ne.s32.totalorder %s163, %s165
      %p169 = scmp.eq.s32.totalorder %s14, 0
      %p170 = por %p168, %p169
      %p171 = scmp.ne.s32.totalorder %s163, %s165
      %p172 = scmp.eq.s32.totalorder %s19, 3
      %p173 = por %p171, %p172
      %p174 = scmp.ne.s32.totalorder %s165, %s166
      %p175 = scmp.eq.s32.totalorder %s19, 0
      %p176 = por %p174, %p175
      %p177 = scmp.ne.s32.totalorder %s165, %s166
      %p178 = scmp.eq.s32.totalorder %s20, 3
      %p179 = por %p177, %p178
      %p181 = scmp.ne.s32.totalorder %s166, %s180
      %p182 = scmp.eq.s32.totalorder %s20, 0
      %p183 = por %p181, %p182
      %s185 = sadd.s32 %s184, 1
      %p188 = scmp.eq.s32.totalorder %s14, 3
      %p189 = scmp.ne.s32.totalorder %s184, %s186
      %p190 = scmp.eq.s32.totalorder %s14, 0
      %p191 = por %p189, %p190
      %p192 = scmp.ne.s32.totalorder %s184, %s186
      %p193 = scmp.eq.s32.totalorder %s19, 3
      %p194 = por %p192, %p193
      %p195 = scmp.ne.s32.totalorder %s186, %s187
      %p196 = scmp.eq.s32.totalorder %s19, 0
      %p197 = por %p195, %p196
      %p198 = scmp.ne.s32.totalorder %s186, %s187
      %p199 = scmp.eq.s32.totalorder %s20, 3
      %p200 = por %p198, %p199
      %p202 = scmp.ne.s32.totalorder %s187, %s201
      %p203 = scmp.eq.s32.totalorder %s20, 0
      %p204 = por %p202, %p203
      %s205 = ssub.s32 %s14, %s21
      %p206 = scmp.eq.s32.totalorder %s205, 0
      %s208 = sadd.s32 %s207, 1
      %s209 = scalar_select %p206, %s207, %s208
      %p212 = pneg %p206
      %p213 = scmp.eq.s32.totalorder %s14, 3
      %p214 = por %p212, %p213
      %p215 = scmp.ne.s32.totalorder %s207, %s210
      %p216 = scmp.eq.s32.totalorder %s14, 0
      %p217 = por %p215, %p216
      %p218 = scmp.ne.s32.totalorder %s207, %s210
      %p219 = scmp.eq.s32.totalorder %s19, 3
      %p220 = por %p218, %p219
      %p221 = scmp.ne.s32.totalorder %s210, %s211
      %p222 = scmp.eq.s32.totalorder %s19, 0
      %p223 = por %p221, %p222
      %p224 = scmp.ne.s32.totalorder %s210, %s211
      %p225 = scmp.eq.s32.totalorder %s20, 3
      %p226 = por %p224, %p225
      %p228 = scmp.ne.s32.totalorder %s211, %s227
      %p229 = scmp.eq.s32.totalorder %s20, 0
      %p230 = por %p228, %p229
      %p231 = scmp.le.s32.totalorder 1, %s14
      %p232 = scmp.lt.s32.totalorder %s14, 5
      %p233 = pnand %p231, %p232
      %p234 = pneg %p233
      // Predicated region
      $region9: #{global_fourier_block.1} parent=5 // pred_check
        _
      $region10: #{global_fourier_block.1} parent=5 // pred_check_branch
        %236 = sbr.rel (%p233) target = $region12
      $region11: #{global_fourier_block.1} parent=5 // pred_region
        %s237 = ssub.s32 %s14, 1
        // Predicated region
        $region13: #{global_fourier_block.1} parent=11 // pred_check
          %p238 = pneg %p113
        $region14: #{global_fourier_block.1} parent=11 // pred_check_branch
          %240 = sbr.rel (%p238) target = $region16
        $region15: #{global_fourier_block.1} parent=11 // pred_region
          _
        $region16: #{global_fourier_block.1} parent=11 // pred_fallthru
          _
        // Predicated region
        $region17: #{global_fourier_block.1} parent=11 // pred_check
          %p241 = pneg %p134
        $region18: #{global_fourier_block.1} parent=11 // pred_check_branch
          %243 = sbr.rel (%p241) target = $region20
        $region19: #{global_fourier_block.1} parent=11 // pred_region
          _
        $region20: #{global_fourier_block.1} parent=11 // pred_fallthru
          _
        // Predicated region
        $region21: #{global_fourier_block.1} parent=11 // pred_check
          %p244 = pneg %p155
        $region22: #{global_fourier_block.1} parent=11 // pred_check_branch
          %246 = sbr.rel (%p244) target = $region24
        $region23: #{global_fourier_block.1} parent=11 // pred_region
          _
        $region24: #{global_fourier_block.1} parent=11 // pred_fallthru
          _
        // Predicated region
        $region25: #{global_fourier_block.1} parent=11 // pred_check
          %p247 = pneg %p176
        $region26: #{global_fourier_block.1} parent=11 // pred_check_branch
          %249 = sbr.rel (%p247) target = $region28
        $region27: #{global_fourier_block.1} parent=11 // pred_region
          _
        $region28: #{global_fourier_block.1} parent=11 // pred_fallthru
          _
        // Predicated region
        $region29: #{global_fourier_block.1} parent=11 // pred_check
          %p250 = pneg %p197
        $region30: #{global_fourier_block.1} parent=11 // pred_check_branch
          %252 = sbr.rel (%p250) target = $region32
        $region31: #{global_fourier_block.1} parent=11 // pred_region
          _
        $region32: #{global_fourier_block.1} parent=11 // pred_fallthru
          _
      $region12: #{global_fourier_block.1} parent=5 // pred_fallthru
        _
      %p253 = scmp.lt.s32.totalorder %s14, 4
      // Predicated region
      $region33: #{global_fourier_block.1} parent=5 // pred_check
        %p254 = pneg %p253
      $region34: #{global_fourier_block.1} parent=5 // pred_check_branch
        %256 = sbr.rel (%p254) target = $region36
      $region35: #{global_fourier_block.1} parent=5 // pred_region
        // Predicated region
        $region37: #{global_fourier_block.1} parent=35 // pred_check
          %p257 = pneg %p34
        $region38: #{global_fourier_block.1} parent=35 // pred_check_branch
          %259 = sbr.rel (%p257) target = $region40
        $region39: #{global_fourier_block.1} parent=35 // pred_region
          %s260 = sand.u32 %s24, 1
          %s261 = sand.u32 %s24, 1
          %s262 = smul.addr %s261, 16
          %s263 = scalar_lea.vmem [#allocation2], %s262
          %s264 = smul.addr %s14, 4
          %s265 = scalar_lea.vmem %s0, %s264
          // Predicated region
          $region41: #{global_fourier_block.1} parent=39 // pred_check
            _
          $region42: #{global_fourier_block.1} parent=39 // pred_check_branch
            %267 = sbr.rel (0) target = $region44
          $region43: #{global_fourier_block.1} parent=39 // pred_region
            // Predicated region
            $region45: #{global_fourier_block.1} parent=43 // pred_check
              _
            $region46: #{global_fourier_block.1} parent=43 // pred_check_branch
              %269 = sbr.rel target = $region48
            $region47: #{global_fourier_block.1} parent=43 // pred_region
              // Predicated region
              $region60: #{global_fourier_block.1} parent=47 // pred_check
                _
              $region61: #{global_fourier_block.1} parent=47 // pred_check_branch
                %290 = sbr.rel (0) target = $region63
              $region62: #{global_fourier_block.1} parent=47 // pred_region
                loop: start=0, step=1, limit=1
                $region64: #{global_fourier_block.1} parent=62 // loop_pre_header
                  _
                $region65: #{global_fourier_block.1} parent=62 // loop_header
                  %s292 = sphi 0, %s296
                  %p293 = scmp.ge.s32.totalorder %s292, 1
                  %s297 = sphi %s265, %s265
                  %s298 = sphi %s263, %s263
                $region66: #{global_fourier_block.1} parent=62 // loop_header_branch
                  %295 = sbr.rel (%p293) target = $region70
                $region67: #{global_fourier_block.1} parent=62 // loop_body
                  _
                $region68: #{global_fourier_block.1} parent=62 // loop_footer
                  %s296 = sadd.s32 1, %s292
                $region69: #{global_fourier_block.1} parent=62 // loop_footer_branch
                  %291 = sbr.rel target = $region65
                $region70: #{global_fourier_block.1} parent=62 // loop_exit
                  _
                loop: start=0, step=1, limit=1
                $region71: #{global_fourier_block.1} parent=62 // loop_pre_header
                  _
                $region72: #{global_fourier_block.1} parent=62 // loop_header
                  %s301 = sphi 0, %s305
                  %p302 = scmp.ge.s32.totalorder %s301, 1
                  %s306 = sphi %s265, %s265
                  %s307 = sphi %s263, %s263
                $region73: #{global_fourier_block.1} parent=62 // loop_header_branch
                  %304 = sbr.rel (%p302) target = $region77
                $region74: #{global_fourier_block.1} parent=62 // loop_body
                  %v308 = vld [vmem:[%s306] sm:$0xf]
                  %309 = vst [vmem:[%s307] sm:$0xf] %v308
                  %v310 = vld [vmem:[%s306 + $0x10] sm:$0xf]
                  %311 = vst [vmem:[%s307 + $0x4] sm:$0xf] %v310
                  %v312 = vld [vmem:[%s306 + $0x20] sm:$0xf]
                  %313 = vst [vmem:[%s307 + $0x8] sm:$0xf] %v312
                  %v314 = vld [vmem:[%s306 + $0x30] sm:$0xf]
                  %315 = vst [vmem:[%s307 + $0xc] sm:$0xf] %v314
                $region75: #{global_fourier_block.1} parent=62 // loop_footer
                  %s305 = sadd.s32 1, %s301
                $region76: #{global_fourier_block.1} parent=62 // loop_footer_branch
                  %300 = sbr.rel target = $region72
                $region77: #{global_fourier_block.1} parent=62 // loop_exit
                  _
              $region63: #{global_fourier_block.1} parent=47 // pred_fallthru
                _
            $region48: #{global_fourier_block.1} parent=43 // pred_fallthru
              _
            // Predicated region
            $region49: #{global_fourier_block.1} parent=43 // pred_check
              _
            $region50: #{global_fourier_block.1} parent=43 // pred_check_branch
              %271 = sbr.rel (0) target = $region52
            $region51: #{global_fourier_block.1} parent=43 // pred_region
              loop: start=0, step=1, limit=1
              $region53: #{global_fourier_block.1} parent=51 // loop_pre_header
                _
              $region54: #{global_fourier_block.1} parent=51 // loop_header
                %s274 = sphi 0, %s278
                %p275 = scmp.ge.s32.totalorder %s274, 1
                %s279 = sphi %s265, %s265
                %s280 = sphi %s263, %s263
              $region55: #{global_fourier_block.1} parent=51 // loop_header_branch
                %277 = sbr.rel (%p275) target = $region59
              $region56: #{global_fourier_block.1} parent=51 // loop_body
                %v281 = vld [vmem:[%s279] sm:$0xf]
                %282 = vst [vmem:[%s280] sm:$0xf] %v281
                %v283 = vld [vmem:[%s279 + $0x10] sm:$0xf]
                %284 = vst [vmem:[%s280 + $0x4] sm:$0xf] %v283
                %v285 = vld [vmem:[%s279 + $0x20] sm:$0xf]
                %286 = vst [vmem:[%s280 + $0x8] sm:$0xf] %v285
                %v287 = vld [vmem:[%s279 + $0x30] sm:$0xf]
                %288 = vst [vmem:[%s280 + $0xc] sm:$0xf] %v287
              $region57: #{global_fourier_block.1} parent=51 // loop_footer
                %s278 = sadd.s32 1, %s274
              $region58: #{global_fourier_block.1} parent=51 // loop_footer_branch
                %273 = sbr.rel target = $region54
              $region59: #{global_fourier_block.1} parent=51 // loop_exit
                _
            $region52: #{global_fourier_block.1} parent=43 // pred_fallthru
              _
          $region44: #{global_fourier_block.1} parent=39 // pred_fallthru
            _
          %316 = vnop
        $region40: #{global_fourier_block.1} parent=35 // pred_fallthru
          _
        // Predicated region
        $region78: #{global_fourier_block.1} parent=35 // pred_check
          %p317 = pneg %p60
        $region79: #{global_fourier_block.1} parent=35 // pred_check_branch
          %319 = sbr.rel (%p317) target = $region81
        $region80: #{global_fourier_block.1} parent=35 // pred_region
          %s320 = sand.u32 %s50, 1
          %s321 = sand.u32 %s50, 1
          %s322 = smul.addr %s321, 32
          %s323 = scalar_lea.vmem [#allocation3], %s322
          %s324 = smul.addr %s14, 8
          %s325 = scalar_lea.vmem %s1, %s324
          // Predicated region
          $region82: #{global_fourier_block.1} parent=80 // pred_check
            _
          $region83: #{global_fourier_block.1} parent=80 // pred_check_branch
            %327 = sbr.rel (0) target = $region85
          $region84: #{global_fourier_block.1} parent=80 // pred_region
            // Predicated region
            $region86: #{global_fourier_block.1} parent=84 // pred_check
              _
            $region87: #{global_fourier_block.1} parent=84 // pred_check_branch
              %329 = sbr.rel (0) target = $region89
            $region88: #{global_fourier_block.1} parent=84 // pred_region
              // Predicated region
              $region101: #{global_fourier_block.1} parent=88 // pred_check
                _
              $region102: #{global_fourier_block.1} parent=88 // pred_check_branch
                %350 = sbr.rel (0) target = $region104
              $region103: #{global_fourier_block.1} parent=88 // pred_region
                loop: start=0, step=1, limit=1
                $region105: #{global_fourier_block.1} parent=103 // loop_pre_header
                  _
                $region106: #{global_fourier_block.1} parent=103 // loop_header
                  %s352 = sphi 0, %s356
                  %p353 = scmp.ge.s32.totalorder %s352, 1
                  %s357 = sphi %s325, %s325
                  %s358 = sphi %s323, %s323
                $region107: #{global_fourier_block.1} parent=103 // loop_header_branch
                  %355 = sbr.rel (%p353) target = $region111
                $region108: #{global_fourier_block.1} parent=103 // loop_body
                  %v359 = vld [vmem:[%s357] sm:$0xff]
                  %360 = vst [vmem:[%s358] sm:$0xff] %v359
                  %v361 = vld [vmem:[%s357 + $0x20] sm:$0xff]
                  %362 = vst [vmem:[%s358 + $0x8] sm:$0xff] %v361
                  %v363 = vld [vmem:[%s357 + $0x40] sm:$0xff]
                  %364 = vst [vmem:[%s358 + $0x10] sm:$0xff] %v363
                  %v365 = vld [vmem:[%s357 + $0x60] sm:$0xff]
                  %366 = vst [vmem:[%s358 + $0x18] sm:$0xff] %v365
                $region109: #{global_fourier_block.1} parent=103 // loop_footer
                  %s356 = sadd.s32 1, %s352
                $region110: #{global_fourier_block.1} parent=103 // loop_footer_branch
                  %351 = sbr.rel target = $region106
                $region111: #{global_fourier_block.1} parent=103 // loop_exit
                  _
              $region104: #{global_fourier_block.1} parent=88 // pred_fallthru
                _
              // Predicated region
              $region112: #{global_fourier_block.1} parent=88 // pred_check
                _
              $region113: #{global_fourier_block.1} parent=88 // pred_check_branch
                %368 = sbr.rel target = $region115
              $region114: #{global_fourier_block.1} parent=88 // pred_region
                _
              $region115: #{global_fourier_block.1} parent=88 // pred_fallthru
                _
            $region89: #{global_fourier_block.1} parent=84 // pred_fallthru
              _
            // Predicated region
            $region90: #{global_fourier_block.1} parent=84 // pred_check
              _
            $region91: #{global_fourier_block.1} parent=84 // pred_check_branch
              %331 = sbr.rel target = $region93
            $region92: #{global_fourier_block.1} parent=84 // pred_region
              loop: start=0, step=1, limit=1
              $region94: #{global_fourier_block.1} parent=92 // loop_pre_header
                _
              $region95: #{global_fourier_block.1} parent=92 // loop_header
                %s334 = sphi 0, %s338
                %p335 = scmp.ge.s32.totalorder %s334, 1
                %s339 = sphi %s325, %s325
                %s340 = sphi %s323, %s323
              $region96: #{global_fourier_block.1} parent=92 // loop_header_branch
                %337 = sbr.rel (%p335) target = $region100
              $region97: #{global_fourier_block.1} parent=92 // loop_body
                %v341 = vld [vmem:[%s339] sm:$0xff]
                %342 = vst [vmem:[%s340] sm:$0xff] %v341
                %v343 = vld [vmem:[%s339 + $0x20] sm:$0xff]
                %344 = vst [vmem:[%s340 + $0x8] sm:$0xff] %v343
                %v345 = vld [vmem:[%s339 + $0x40] sm:$0xff]
                %346 = vst [vmem:[%s340 + $0x10] sm:$0xff] %v345
                %v347 = vld [vmem:[%s339 + $0x60] sm:$0xff]
                %348 = vst [vmem:[%s340 + $0x18] sm:$0xff] %v347
              $region98: #{global_fourier_block.1} parent=92 // loop_footer
                %s338 = sadd.s32 1, %s334
              $region99: #{global_fourier_block.1} parent=92 // loop_footer_branch
                %333 = sbr.rel target = $region95
              $region100: #{global_fourier_block.1} parent=92 // loop_exit
                _
            $region93: #{global_fourier_block.1} parent=84 // pred_fallthru
              _
          $region85: #{global_fourier_block.1} parent=80 // pred_fallthru
            _
          %369 = vnop
        $region81: #{global_fourier_block.1} parent=35 // pred_fallthru
          _
        // Predicated region
        $region116: #{global_fourier_block.1} parent=35 // pred_check
          %p370 = pneg %p86
        $region117: #{global_fourier_block.1} parent=35 // pred_check_branch
          %372 = sbr.rel (%p370) target = $region119
        $region118: #{global_fourier_block.1} parent=35 // pred_region
          %s373 = sand.u32 %s76, 1
          %s374 = sand.u32 %s76, 1
          %s375 = smul.addr %s374, 32
          %s376 = scalar_lea.vmem [#allocation4], %s375
          %s377 = smul.addr %s14, 8
          %s378 = scalar_lea.vmem %s2, %s377
          // Predicated region
          $region120: #{global_fourier_block.1} parent=118 // pred_check
            _
          $region121: #{global_fourier_block.1} parent=118 // pred_check_branch
            %380 = sbr.rel (0) target = $region123
          $region122: #{global_fourier_block.1} parent=118 // pred_region
            // Predicated region
            $region124: #{global_fourier_block.1} parent=122 // pred_check
              _
            $region125: #{global_fourier_block.1} parent=122 // pred_check_branch
              %382 = sbr.rel (0) target = $region127
            $region126: #{global_fourier_block.1} parent=122 // pred_region
              // Predicated region
              $region139: #{global_fourier_block.1} parent=126 // pred_check
                _
              $region140: #{global_fourier_block.1} parent=126 // pred_check_branch
                %403 = sbr.rel (0) target = $region142
              $region141: #{global_fourier_block.1} parent=126 // pred_region
                loop: start=0, step=1, limit=1
                $region143: #{global_fourier_block.1} parent=141 // loop_pre_header
                  _
                $region144: #{global_fourier_block.1} parent=141 // loop_header
                  %s405 = sphi 0, %s409
                  %p406 = scmp.ge.s32.totalorder %s405, 1
                  %s410 = sphi %s378, %s378
                  %s411 = sphi %s376, %s376
                $region145: #{global_fourier_block.1} parent=141 // loop_header_branch
                  %408 = sbr.rel (%p406) target = $region149
                $region146: #{global_fourier_block.1} parent=141 // loop_body
                  %v412 = vld [vmem:[%s410] sm:$0xff]
                  %413 = vst [vmem:[%s411] sm:$0xff] %v412
                  %v414 = vld [vmem:[%s410 + $0x20] sm:$0xff]
                  %415 = vst [vmem:[%s411 + $0x8] sm:$0xff] %v414
                  %v416 = vld [vmem:[%s410 + $0x40] sm:$0xff]
                  %417 = vst [vmem:[%s411 + $0x10] sm:$0xff] %v416
                  %v418 = vld [vmem:[%s410 + $0x60] sm:$0xff]
                  %419 = vst [vmem:[%s411 + $0x18] sm:$0xff] %v418
                $region147: #{global_fourier_block.1} parent=141 // loop_footer
                  %s409 = sadd.s32 1, %s405
                $region148: #{global_fourier_block.1} parent=141 // loop_footer_branch
                  %404 = sbr.rel target = $region144
                $region149: #{global_fourier_block.1} parent=141 // loop_exit
                  _
              $region142: #{global_fourier_block.1} parent=126 // pred_fallthru
                _
              // Predicated region
              $region150: #{global_fourier_block.1} parent=126 // pred_check
                _
              $region151: #{global_fourier_block.1} parent=126 // pred_check_branch
                %421 = sbr.rel target = $region153
              $region152: #{global_fourier_block.1} parent=126 // pred_region
                _
              $region153: #{global_fourier_block.1} parent=126 // pred_fallthru
                _
            $region127: #{global_fourier_block.1} parent=122 // pred_fallthru
              _
            // Predicated region
            $region128: #{global_fourier_block.1} parent=122 // pred_check
              _
            $region129: #{global_fourier_block.1} parent=122 // pred_check_branch
              %384 = sbr.rel target = $region131
            $region130: #{global_fourier_block.1} parent=122 // pred_region
              loop: start=0, step=1, limit=1
              $region132: #{global_fourier_block.1} parent=130 // loop_pre_header
                _
              $region133: #{global_fourier_block.1} parent=130 // loop_header
                %s387 = sphi 0, %s391
                %p388 = scmp.ge.s32.totalorder %s387, 1
                %s392 = sphi %s378, %s378
                %s393 = sphi %s376, %s376
              $region134: #{global_fourier_block.1} parent=130 // loop_header_branch
                %390 = sbr.rel (%p388) target = $region138
              $region135: #{global_fourier_block.1} parent=130 // loop_body
                %v394 = vld [vmem:[%s392] sm:$0xff]
                %395 = vst [vmem:[%s393] sm:$0xff] %v394
                %v396 = vld [vmem:[%s392 + $0x20] sm:$0xff]
                %397 = vst [vmem:[%s393 + $0x8] sm:$0xff] %v396
                %v398 = vld [vmem:[%s392 + $0x40] sm:$0xff]
                %399 = vst [vmem:[%s393 + $0x10] sm:$0xff] %v398
                %v400 = vld [vmem:[%s392 + $0x60] sm:$0xff]
                %401 = vst [vmem:[%s393 + $0x18] sm:$0xff] %v400
              $region136: #{global_fourier_block.1} parent=130 // loop_footer
                %s391 = sadd.s32 1, %s387
              $region137: #{global_fourier_block.1} parent=130 // loop_footer_branch
                %386 = sbr.rel target = $region133
              $region138: #{global_fourier_block.1} parent=130 // loop_exit
                _
            $region131: #{global_fourier_block.1} parent=122 // pred_fallthru
              _
          $region123: #{global_fourier_block.1} parent=118 // pred_fallthru
            _
          %422 = vnop
        $region119: #{global_fourier_block.1} parent=35 // pred_fallthru
          _
      $region36: #{global_fourier_block.1} parent=5 // pred_fallthru
        _
      %p423 = scmp.le.s32.totalorder 1, %s14
      %p424 = scmp.lt.s32.totalorder %s14, 5
      %p425 = pnand %p423, %p424
      %p426 = pneg %p425
      // Predicated region
      $region154: #{global_fourier_block.1} parent=5 // pred_check
        _
      $region155: #{global_fourier_block.1} parent=5 // pred_check_branch
        %428 = sbr.rel (%p425) target = $region157
      $region156: #{global_fourier_block.1} parent=5 // pred_region
        %s429 = ssub.s32 %s14, 1
        %s430 = sand.u32 %s27, 1
        %s431 = sand.u32 %s27, 1
        %s432 = smul.addr %s431, 16
        %s433 = scalar_lea.vmem [#allocation2], %s432
        // Predicated region
        $region158: #{global_fourier_block.1} parent=156 // pred_check
          %p434 = pneg %p40
        $region159: #{global_fourier_block.1} parent=156 // pred_check_branch
          %436 = sbr.rel (%p434) target = $region161
        $region160: #{global_fourier_block.1} parent=156 // pred_region
          _
        $region161: #{global_fourier_block.1} parent=156 // pred_fallthru
          _
        %s437 = sand.u32 %s53, 1
        %s438 = sand.u32 %s53, 1
        %s439 = smul.addr %s438, 32
        %s440 = scalar_lea.vmem [#allocation3], %s439
        // Predicated region
        $region162: #{global_fourier_block.1} parent=156 // pred_check
          %p441 = pneg %p66
        $region163: #{global_fourier_block.1} parent=156 // pred_check_branch
          %443 = sbr.rel (%p441) target = $region165
        $region164: #{global_fourier_block.1} parent=156 // pred_region
          _
        $region165: #{global_fourier_block.1} parent=156 // pred_fallthru
          _
        %s444 = sand.u32 %s79, 1
        %s445 = sand.u32 %s79, 1
        %s446 = smul.addr %s445, 32
        %s447 = scalar_lea.vmem [#allocation4], %s446
        // Predicated region
        $region166: #{global_fourier_block.1} parent=156 // pred_check
          %p448 = pneg %p92
        $region167: #{global_fourier_block.1} parent=156 // pred_check_branch
          %450 = sbr.rel (%p448) target = $region169
        $region168: #{global_fourier_block.1} parent=156 // pred_region
          _
        $region169: #{global_fourier_block.1} parent=156 // pred_fallthru
          _
        %s451 = sand.u32 %s27, 1
        %s452 = sand.u32 %s27, 1
        %s453 = smul.addr %s452, 16
        %s454 = scalar_lea.vmem [#allocation2], %s453
        %p455 = pneg %p40
        %p456 = pneg %p37
        %s457 = sand.u32 %s53, 1
        %s458 = sand.u32 %s53, 1
        %s459 = smul.addr %s458, 32
        %s460 = scalar_lea.vmem [#allocation3], %s459
        %p461 = pneg %p66
        %p462 = pneg %p63
        %s463 = sand.u32 %s79, 1
        %s464 = sand.u32 %s79, 1
        %s465 = smul.addr %s464, 32
        %s466 = scalar_lea.vmem [#allocation4], %s465
        %p467 = pneg %p92
        %p468 = pneg %p89
        %p469 = pneg %p113
        %p470 = pneg %p110
        %p471 = pneg %p134
        %p472 = pneg %p131
        %p473 = pneg %p155
        %p474 = pneg %p152
        %p475 = pneg %p176
        %p476 = pneg %p173
        %p477 = pneg %p197
        %p478 = pneg %p194
        %p479 = pneg %p223
        %p480 = pneg %p220
        %s481 = sand.u32 %s210, 1
        %s482 = sand.u32 %s210, 1
        %s483 = smul.addr %s482, 32
        %s484 = scalar_lea.vmem [#allocation5], %s483
        %v486 = vld [vmem:[%s433] sm:$0xf]
        %v487 = vld [vmem:[%s433 + $0x4] sm:$0xf]
        %v488 = vld [vmem:[%s433 + $0x8] sm:$0xf]
        %v489 = vld [vmem:[%s433 + $0xc] sm:$0xf]
        %v490 = vld [vmem:[%s3] sm:$0xf]
        %v491 = vld [vmem:[%s3 + $0x4] sm:$0xf]
        %v492 = vld [vmem:[%s3 + $0x8] sm:$0xf]
        %v493 = vld [vmem:[%s3 + $0xc] sm:$0xf]
        %v494 = vld [vmem:[%s3 + $0x10] sm:$0xf]
        %v495 = vld [vmem:[%s3 + $0x14] sm:$0xf]
        %v496 = vld [vmem:[%s3 + $0x18] sm:$0xf]
        %v497 = vld [vmem:[%s3 + $0x1c] sm:$0xf]
        %v506 = vunpack.c.l.b16 %v490
        %v507 = vunpack.c.l.b16 %v491
        %v508 = vunpack.c.l.b16 %v492
        %v509 = vunpack.c.l.b16 %v493
        %v510 = vunpack.c.l.b16 %v494
        %v511 = vunpack.c.l.b16 %v495
        %v512 = vunpack.c.l.b16 %v496
        %v513 = vunpack.c.l.b16 %v497
        %v514 = vpack.c.b16 %v507, %v506
        %v515 = vpack.c.b16 %v509, %v508
        %v516 = vpack.c.b16 %v511, %v510
        %v517 = vpack.c.b16 %v513, %v512
        %v522 = vunpack.c.l.b16 %v486
        %v523 = vunpack.c.l.b16 %v487
        %v524 = vunpack.c.l.b16 %v488
        %v525 = vunpack.c.l.b16 %v489
        %v526 = vpack.c.b16 %v523, %v522
        %v527 = vpack.c.b16 %v525, %v524
        %vm530 = vcmask 261120
        %v532 = vsel %vm530, %v514, 0
        %v535 = vsel %vm530, %v515, 0
        %v538 = vsel %vm530, %v516, 0
        %v541 = vsel %vm530, %v517, 0
        %543 = vmatprep.subr.bf16.mxu0 0
        %544 = vmatpush1.bf16.msra.mxu0 %v526
        %545 = vmatprep.subr.bf16.mxu0 0
        %546 = vmatpush1.bf16.msra.mxu0 %v527
        %547 = vmatprep.subr.bf16.mxu0 0
        %548 = vmatpush1.bf16.msra.mxu0 0
        %549 = vmatprep.subr.bf16.mxu0 0
        %550 = vmatpush1.bf16.msra.mxu0 0
        %551 = vmatprep.subr.bf16.mxu0 0
        %552 = vmatpush1.bf16.msra.mxu0 0
        %553 = vmatprep.subr.bf16.mxu0 0
        %554 = vmatpush1.bf16.msra.mxu0 0
        %555 = vmatprep.subr.bf16.mxu0 0
        %556 = vmatpush1.bf16.msra.mxu0 0
        %557 = vmatprep.subr.bf16.mxu0 0
        %558 = vmatpush1.bf16.msra.mxu0 0
        %559 = vmatprep.subr.bf16.mxu0 0
        %560 = vmatpush1.bf16.msra.mxu0 0
        %561 = vmatprep.subr.bf16.mxu0 0
        %562 = vmatpush1.bf16.msra.mxu0 0
        %563 = vmatprep.subr.bf16.mxu0 0
        %564 = vmatpush1.bf16.msra.mxu0 0
        %565 = vmatprep.subr.bf16.mxu0 0
        %566 = vmatpush1.bf16.msra.mxu0 0
        %567 = vmatprep.subr.bf16.mxu0 0
        %568 = vmatpush1.bf16.msra.mxu0 0
        %569 = vmatprep.subr.bf16.mxu0 0
        %570 = vmatpush1.bf16.msra.mxu0 0
        %571 = vmatprep.subr.bf16.mxu0 0
        %572 = vmatpush1.bf16.msra.mxu0 0
        %573 = vmatprep.subr.bf16.mxu0 0
        %574 = vmatpush1.bf16.msra.mxu0 0
        %575 = vmatprep.mubr.bf16.mxu0 0
        %576 = vmatmul.mubr.bf16.gmra.mrb[0].mxu0 %v532
        %v577 = vpop.f32.mrb[0].mxu0
        %v578 = vadd.f32 0.0, %v577
        %v579 = vpop.f32.mrb[0].mxu0
        %v580 = vpop.f32.mrb[0].mxu0
        %v581 = vadd.f32 0.0, %v580
        %v582 = vpop.f32.mrb[0].mxu0
        %583 = vmatprep.mubr.bf16.mxu0 0
        %584 = vmatmul.mubr.bf16.gmra.mrb[0].mxu0 %v535
        %v585 = vpop.f32.mrb[0].mxu0
        %v586 = vadd.f32 0.0, %v585
        %v587 = vpop.f32.mrb[0].mxu0
        %v588 = vpop.f32.mrb[0].mxu0
        %v589 = vadd.f32 0.0, %v588
        %v590 = vpop.f32.mrb[0].mxu0
        %591 = vmatprep.mubr.bf16.mxu0 0
        %592 = vmatmul.mubr.bf16.gmra.mrb[0].mxu0 %v538
        %v593 = vpop.f32.mrb[0].mxu0
        %v594 = vadd.f32 0.0, %v593
        %v595 = vpop.f32.mrb[0].mxu0
        %v596 = vpop.f32.mrb[0].mxu0
        %v597 = vadd.f32 0.0, %v596
        %v598 = vpop.f32.mrb[0].mxu0
        %599 = vmatprep.mubr.bf16.mxu0 0
        %600 = vmatmul.mubr.bf16.gmra.mrb[0].mxu0 %v541
        %v601 = vpop.f32.mrb[0].mxu0
        %v602 = vadd.f32 0.0, %v601
        %v603 = vpop.f32.mrb[0].mxu0
        %v604 = vpop.f32.mrb[0].mxu0
        %v605 = vadd.f32 0.0, %v604
        %v606 = vpop.f32.mrb[0].mxu0
        %607 = vdwg.mxu0
        %v608 = vpack.c.bf16 %v581, %v578
        %v609 = vpack.c.bf16 %v589, %v586
        %v610 = vpack.c.bf16 %v597, %v594
        %v611 = vpack.c.bf16 %v605, %v602
        %v612 = vld [vmem:[%s4] sm:$0xff]
        %v613 = vld [vmem:[%s4 + $0x8] sm:$0xff]
        %v614 = vld [vmem:[%s4 + $0x10] sm:$0xff]
        %v615 = vld [vmem:[%s4 + $0x18] sm:$0xff]
        %v616 = vld [vmem:[%s4 + $0x20] sm:$0xff]
        %v617 = vld [vmem:[%s4 + $0x28] sm:$0xff]
        %v618 = vld [vmem:[%s4 + $0x30] sm:$0xff]
        %v619 = vld [vmem:[%s4 + $0x38] sm:$0xff]
        %v620 = vld [vmem:[%s4 + $0x40] sm:$0xff]
        %v621 = vld [vmem:[%s4 + $0x48] sm:$0xff]
        %v622 = vld [vmem:[%s4 + $0x50] sm:$0xff]
        %v623 = vld [vmem:[%s4 + $0x58] sm:$0xff]
        %v624 = vld [vmem:[%s4 + $0x60] sm:$0xff]
        %v625 = vld [vmem:[%s4 + $0x68] sm:$0xff]
        %v626 = vld [vmem:[%s4 + $0x70] sm:$0xff]
        %v627 = vld [vmem:[%s4 + $0x78] sm:$0xff]
        %v644 = vunpack.c.l.b16 %v612
        %v645 = vunpack.c.h.b16 %v612
        %v646 = vunpack.c.l.b16 %v613
        %v647 = vunpack.c.h.b16 %v613
        %v648 = vunpack.c.l.b16 %v614
        %v649 = vunpack.c.h.b16 %v614
        %v650 = vunpack.c.l.b16 %v615
        %v651 = vunpack.c.h.b16 %v615
        %v652 = vunpack.c.l.b16 %v616
        %v653 = vunpack.c.h.b16 %v616
        %v654 = vunpack.c.l.b16 %v617
        %v655 = vunpack.c.h.b16 %v617
        %v656 = vunpack.c.l.b16 %v618
        %v657 = vunpack.c.h.b16 %v618
        %v658 = vunpack.c.l.b16 %v619
        %v659 = vunpack.c.h.b16 %v619
        %v660 = vunpack.c.l.b16 %v620
        %v661 = vunpack.c.h.b16 %v620
        %v662 = vunpack.c.l.b16 %v621
        %v663 = vunpack.c.h.b16 %v621
        %v664 = vunpack.c.l.b16 %v622
        %v665 = vunpack.c.h.b16 %v622
        %v666 = vunpack.c.l.b16 %v623
        %v667 = vunpack.c.h.b16 %v623
        %v668 = vunpack.c.l.b16 %v624
        %v669 = vunpack.c.h.b16 %v624
        %v670 = vunpack.c.l.b16 %v625
        %v671 = vunpack.c.h.b16 %v625
        %v672 = vunpack.c.l.b16 %v626
        %v673 = vunpack.c.h.b16 %v626
        %v674 = vunpack.c.l.b16 %v627
        %v675 = vunpack.c.h.b16 %v627
        %v676 = vpack.c.b16 %v646, %v644
        %v677 = vpack.c.b16 %v647, %v645
        %v678 = vpack.c.b16 %v650, %v648
        %v679 = vpack.c.b16 %v651, %v649
        %v680 = vpack.c.b16 %v654, %v652
        %v681 = vpack.c.b16 %v655, %v653
        %v682 = vpack.c.b16 %v658, %v656
        %v683 = vpack.c.b16 %v659, %v657
        %v684 = vpack.c.b16 %v662, %v660
        %v685 = vpack.c.b16 %v663, %v661
        %v686 = vpack.c.b16 %v666, %v664
        %v687 = vpack.c.b16 %v667, %v665
        %v688 = vpack.c.b16 %v670, %v668
        %v689 = vpack.c.b16 %v671, %v669
        %v690 = vpack.c.b16 %v674, %v672
        %v691 = vpack.c.b16 %v675, %v673
        %708 = vmatprep.subr.bf16.mxu0 %v677
        %709 = vmatpush1.bf16.msra.mxu0 %v676
        %710 = vmatprep.subr.bf16.mxu0 %v679
        %711 = vmatpush1.bf16.msra.mxu0 %v678
        %712 = vmatprep.subr.bf16.mxu0 %v681
        %713 = vmatpush1.bf16.msra.mxu0 %v680
        %714 = vmatprep.subr.bf16.mxu0 %v683
        %715 = vmatpush1.bf16.msra.mxu0 %v682
        %716 = vmatprep.subr.bf16.mxu0 %v685
        %717 = vmatpush1.bf16.msra.mxu0 %v684
        %718 = vmatprep.subr.bf16.mxu0 %v687
        %719 = vmatpush1.bf16.msra.mxu0 %v686
        %720 = vmatprep.subr.bf16.mxu0 %v689
        %721 = vmatpush1.bf16.msra.mxu0 %v688
        %722 = vmatprep.subr.bf16.mxu0 %v691
        %723 = vmatpush1.bf16.msra.mxu0 %v690
        %724 = vmatprep.subr.bf16.mxu0 0
        %725 = vmatpush1.bf16.msra.mxu0 0
        %726 = vmatprep.subr.bf16.mxu0 0
        %727 = vmatpush1.bf16.msra.mxu0 0
        %728 = vmatprep.subr.bf16.mxu0 0
        %729 = vmatpush1.bf16.msra.mxu0 0
        %730 = vmatprep.subr.bf16.mxu0 0
        %731 = vmatpush1.bf16.msra.mxu0 0
        %732 = vmatprep.subr.bf16.mxu0 0
        %733 = vmatpush1.bf16.msra.mxu0 0
        %734 = vmatprep.subr.bf16.mxu0 0
        %735 = vmatpush1.bf16.msra.mxu0 0
        %736 = vmatprep.subr.bf16.mxu0 0
        %737 = vmatpush1.bf16.msra.mxu0 0
        %738 = vmatprep.subr.bf16.mxu0 0
        %739 = vmatpush1.bf16.msra.mxu0 0
        %740 = vmatprep.mubr.bf16.mxu0 0
        %741 = vmatmul.mubr.bf16.gmra.mrb[0].mxu0 %v608
        %v742 = vpop.f32.mrb[0].mxu0
        %v743 = vadd.f32 0.0, %v742
        %v744 = vpop.f32.mrb[0].mxu0
        %v745 = vadd.f32 0.0, %v744
        %v746 = vpop.f32.mrb[0].mxu0
        %v747 = vadd.f32 0.0, %v746
        %v748 = vpop.f32.mrb[0].mxu0
        %v749 = vadd.f32 0.0, %v748
        %750 = vmatprep.mubr.bf16.mxu0 0
        %751 = vmatmul.mubr.bf16.gmra.mrb[0].mxu0 %v609
        %v752 = vpop.f32.mrb[0].mxu0
        %v753 = vadd.f32 0.0, %v752
        %v754 = vpop.f32.mrb[0].mxu0
        %v755 = vadd.f32 0.0, %v754
        %v756 = vpop.f32.mrb[0].mxu0
        %v757 = vadd.f32 0.0, %v756
        %v758 = vpop.f32.mrb[0].mxu0
        %v759 = vadd.f32 0.0, %v758
        %760 = vmatprep.mubr.bf16.mxu0 0
        %761 = vmatmul.mubr.bf16.gmra.mrb[0].mxu0 %v610
        %v762 = vpop.f32.mrb[0].mxu0
        %v763 = vadd.f32 0.0, %v762
        %v764 = vpop.f32.mrb[0].mxu0
        %v765 = vadd.f32 0.0, %v764
        %v766 = vpop.f32.mrb[0].mxu0
        %v767 = vadd.f32 0.0, %v766
        %v768 = vpop.f32.mrb[0].mxu0
        %v769 = vadd.f32 0.0, %v768
        %770 = vmatprep.mubr.bf16.mxu0 0
        %771 = vmatmul.mubr.bf16.gmra.mrb[0].mxu0 %v611
        %v772 = vpop.f32.mrb[0].mxu0
        %v773 = vadd.f32 0.0, %v772
        %v774 = vpop.f32.mrb[0].mxu0
        %v775 = vadd.f32 0.0, %v774
        %v776 = vpop.f32.mrb[0].mxu0
        %v777 = vadd.f32 0.0, %v776
        %v778 = vpop.f32.mrb[0].mxu0
        %v779 = vadd.f32 0.0, %v778
        %780 = vdwg.mxu0
        %v781 = vsub.f32 %v743, %v765
        %v782 = vsub.f32 %v747, %v769
        %v783 = vsub.f32 %v753, %v775
        %v784 = vsub.f32 %v757, %v779
        %v785 = vadd.f32 %v745, %v763
        %v786 = vadd.f32 %v749, %v767
        %v787 = vadd.f32 %v755, %v773
        %v788 = vadd.f32 %v759, %v777
        %v789 = vld [vmem:[%s440] sm:$0xff]
        %v790 = vld [vmem:[%s440 + $0x8] sm:$0xff]
        %v791 = vld [vmem:[%s440 + $0x10] sm:$0xff]
        %v792 = vld [vmem:[%s440 + $0x18] sm:$0xff]
        %v793 = vld [vmem:[%s447] sm:$0xff]
        %v794 = vld [vmem:[%s447 + $0x8] sm:$0xff]
        %v795 = vld [vmem:[%s447 + $0x10] sm:$0xff]
        %v796 = vld [vmem:[%s447 + $0x18] sm:$0xff]
        %v797 = vmul.f32 %v781, %v789
        %v798 = vmul.f32 %v782, %v790
        %v799 = vmul.f32 %v783, %v791
        %v800 = vmul.f32 %v784, %v792
        %v801 = vmul.f32 %v785, %v793
        %v802 = vmul.f32 %v786, %v794
        %v803 = vmul.f32 %v787, %v795
        %v804 = vmul.f32 %v788, %v796
        %v805 = vsub.f32 %v797, %v801
        %v806 = vsub.f32 %v798, %v802
        %v807 = vsub.f32 %v799, %v803
        %v808 = vsub.f32 %v800, %v804
        %v809 = vpack.c.bf16 %v806, %v805
        %v810 = vpack.c.bf16 %v808, %v807
        %v811 = vmul.f32 %v781, %v793
        %v812 = vmul.f32 %v782, %v794
        %v813 = vmul.f32 %v783, %v795
        %v814 = vmul.f32 %v784, %v796
        %v815 = vmul.f32 %v785, %v789
        %v816 = vmul.f32 %v786, %v790
        %v817 = vmul.f32 %v787, %v791
        %v818 = vmul.f32 %v788, %v792
        %v819 = vadd.f32 %v811, %v815
        %v820 = vadd.f32 %v812, %v816
        %v821 = vadd.f32 %v813, %v817
        %v822 = vadd.f32 %v814, %v818
        %v823 = vpack.c.bf16 %v820, %v819
        %v824 = vpack.c.bf16 %v822, %v821
        %v825 = vld [vmem:[%s5] sm:$0xff]
        %v826 = vld [vmem:[%s5 + $0x8] sm:$0xff]
        %v827 = vld [vmem:[%s5 + $0x10] sm:$0xff]
        %v828 = vld [vmem:[%s5 + $0x18] sm:$0xff]
        %v829 = vld [vmem:[%s5 + $0x20] sm:$0xff]
        %v830 = vld [vmem:[%s5 + $0x28] sm:$0xff]
        %v831 = vld [vmem:[%s5 + $0x30] sm:$0xff]
        %v832 = vld [vmem:[%s5 + $0x38] sm:$0xff]
        %v833 = vld [vmem:[%s5 + $0x40] sm:$0xff]
        %v834 = vld [vmem:[%s5 + $0x48] sm:$0xff]
        %v835 = vld [vmem:[%s5 + $0x50] sm:$0xff]
        %v836 = vld [vmem:[%s5 + $0x58] sm:$0xff]
        %v837 = vld [vmem:[%s5 + $0x60] sm:$0xff]
        %v838 = vld [vmem:[%s5 + $0x68] sm:$0xff]
        %v839 = vld [vmem:[%s5 + $0x70] sm:$0xff]
        %v840 = vld [vmem:[%s5 + $0x78] sm:$0xff]
        %v857 = vunpack.c.l.b16 %v825
        %v858 = vunpack.c.h.b16 %v825
        %v859 = vunpack.c.l.b16 %v826
        %v860 = vunpack.c.h.b16 %v826
        %v861 = vunpack.c.l.b16 %v827
        %v862 = vunpack.c.h.b16 %v827
        %v863 = vunpack.c.l.b16 %v828
        %v864 = vunpack.c.h.b16 %v828
        %v865 = vunpack.c.l.b16 %v829
        %v866 = vunpack.c.h.b16 %v829
        %v867 = vunpack.c.l.b16 %v830
        %v868 = vunpack.c.h.b16 %v830
        %v869 = vunpack.c.l.b16 %v831
        %v870 = vunpack.c.h.b16 %v831
        %v871 = vunpack.c.l.b16 %v832
        %v872 = vunpack.c.h.b16 %v832
        %v873 = vunpack.c.l.b16 %v833
        %v874 = vunpack.c.h.b16 %v833
        %v875 = vunpack.c.l.b16 %v834
        %v876 = vunpack.c.h.b16 %v834
        %v877 = vunpack.c.l.b16 %v835
        %v878 = vunpack.c.h.b16 %v835
        %v879 = vunpack.c.l.b16 %v836
        %v880 = vunpack.c.h.b16 %v836
        %v881 = vunpack.c.l.b16 %v837
        %v882 = vunpack.c.h.b16 %v837
        %v883 = vunpack.c.l.b16 %v838
        %v884 = vunpack.c.h.b16 %v838
        %v885 = vunpack.c.l.b16 %v839
        %v886 = vunpack.c.h.b16 %v839
        %v887 = vunpack.c.l.b16 %v840
        %v888 = vunpack.c.h.b16 %v840
        %v889 = vpack.c.b16 %v859, %v857
        %v890 = vpack.c.b16 %v860, %v858
        %v891 = vpack.c.b16 %v863, %v861
        %v892 = vpack.c.b16 %v864, %v862
        %v893 = vpack.c.b16 %v867, %v865
        %v894 = vpack.c.b16 %v868, %v866
        %v895 = vpack.c.b16 %v871, %v869
        %v896 = vpack.c.b16 %v872, %v870
        %v897 = vpack.c.b16 %v875, %v873
        %v898 = vpack.c.b16 %v876, %v874
        %v899 = vpack.c.b16 %v879, %v877
        %v900 = vpack.c.b16 %v880, %v878
        %v901 = vpack.c.b16 %v883, %v881
        %v902 = vpack.c.b16 %v884, %v882
        %v903 = vpack.c.b16 %v887, %v885
        %v904 = vpack.c.b16 %v888, %v886
        %921 = vmatprep.subr.bf16.mxu0 %v890
        %922 = vmatpush1.bf16.msra.mxu0 %v889
        %923 = vmatprep.subr.bf16.mxu0 %v892
        %924 = vmatpush1.bf16.msra.mxu0 %v891
        %925 = vmatprep.subr.bf16.mxu0 %v894
        %926 = vmatpush1.bf16.msra.mxu0 %v893
        %927 = vmatprep.subr.bf16.mxu0 %v896
        %928 = vmatpush1.bf16.msra.mxu0 %v895
        %929 = vmatprep.subr.bf16.mxu0 %v898
        %930 = vmatpush1.bf16.msra.mxu0 %v897
        %931 = vmatprep.subr.bf16.mxu0 %v900
        %932 = vmatpush1.bf16.msra.mxu0 %v899
        %933 = vmatprep.subr.bf16.mxu0 %v902
        %934 = vmatpush1.bf16.msra.mxu0 %v901
        %935 = vmatprep.subr.bf16.mxu0 %v904
        %936 = vmatpush1.bf16.msra.mxu0 %v903
        %937 = vmatprep.subr.bf16.mxu0 0
        %938 = vmatpush1.bf16.msra.mxu0 0
        %939 = vmatprep.subr.bf16.mxu0 0
        %940 = vmatpush1.bf16.msra.mxu0 0
        %941 = vmatprep.subr.bf16.mxu0 0
        %942 = vmatpush1.bf16.msra.mxu0 0
        %943 = vmatprep.subr.bf16.mxu0 0
        %944 = vmatpush1.bf16.msra.mxu0 0
        %945 = vmatprep.subr.bf16.mxu0 0
        %946 = vmatpush1.bf16.msra.mxu0 0
        %947 = vmatprep.subr.bf16.mxu0 0
        %948 = vmatpush1.bf16.msra.mxu0 0
        %949 = vmatprep.subr.bf16.mxu0 0
        %950 = vmatpush1.bf16.msra.mxu0 0
        %951 = vmatprep.subr.bf16.mxu0 0
        %952 = vmatpush1.bf16.msra.mxu0 0
        %953 = vmatprep.mubr.bf16.mxu0 0
        %954 = vmatmul.mubr.bf16.gmra.mrb[0].mxu0 %v809
        %v955 = vpop.f32.mrb[0].mxu0
        %v956 = vadd.f32 0.0, %v955
        %v957 = vpop.f32.mrb[0].mxu0
        %v958 = vadd.f32 0.0, %v957
        %v959 = vpop.f32.mrb[0].mxu0
        %v960 = vadd.f32 0.0, %v959
        %v961 = vpop.f32.mrb[0].mxu0
        %v962 = vadd.f32 0.0, %v961
        %963 = vmatprep.mubr.bf16.mxu0 0
        %964 = vmatmul.mubr.bf16.gmra.mrb[0].mxu0 %v810
        %v965 = vpop.f32.mrb[0].mxu0
        %v966 = vadd.f32 0.0, %v965
        %v967 = vpop.f32.mrb[0].mxu0
        %v968 = vadd.f32 0.0, %v967
        %v969 = vpop.f32.mrb[0].mxu0
        %v970 = vadd.f32 0.0, %v969
        %v971 = vpop.f32.mrb[0].mxu0
        %v972 = vadd.f32 0.0, %v971
        %973 = vdwg.mxu0
        %974 = vmatprep.subr.bf16.mxu0 %v890
        %975 = vmatpush1.bf16.msra.mxu0 %v889
        %976 = vmatprep.subr.bf16.mxu0 %v892
        %977 = vmatpush1.bf16.msra.mxu0 %v891
        %978 = vmatprep.subr.bf16.mxu0 %v894
        %979 = vmatpush1.bf16.msra.mxu0 %v893
        %980 = vmatprep.subr.bf16.mxu0 %v896
        %981 = vmatpush1.bf16.msra.mxu0 %v895
        %982 = vmatprep.subr.bf16.mxu0 %v898
        %983 = vmatpush1.bf16.msra.mxu0 %v897
        %984 = vmatprep.subr.bf16.mxu0 %v900
        %985 = vmatpush1.bf16.msra.mxu0 %v899
        %986 = vmatprep.subr.bf16.mxu0 %v902
        %987 = vmatpush1.bf16.msra.mxu0 %v901
        %988 = vmatprep.subr.bf16.mxu0 %v904
        %989 = vmatpush1.bf16.msra.mxu0 %v903
        %990 = vmatprep.subr.bf16.mxu0 0
        %991 = vmatpush1.bf16.msra.mxu0 0
        %992 = vmatprep.subr.bf16.mxu0 0
        %993 = vmatpush1.bf16.msra.mxu0 0
        %994 = vmatprep.subr.bf16.mxu0 0
        %995 = vmatpush1.bf16.msra.mxu0 0
        %996 = vmatprep.subr.bf16.mxu0 0
        %997 = vmatpush1.bf16.msra.mxu0 0
        %998 = vmatprep.subr.bf16.mxu0 0
        %999 = vmatpush1.bf16.msra.mxu0 0
        %1000 = vmatprep.subr.bf16.mxu0 0
        %1001 = vmatpush1.bf16.msra.mxu0 0
        %1002 = vmatprep.subr.bf16.mxu0 0
        %1003 = vmatpush1.bf16.msra.mxu0 0
        %1004 = vmatprep.subr.bf16.mxu0 0
        %1005 = vmatpush1.bf16.msra.mxu0 0
        %1006 = vmatprep.mubr.bf16.mxu0 0
        %1007 = vmatmul.mubr.bf16.gmra.mrb[0].mxu0 %v823
        %v1008 = vpop.f32.mrb[0].mxu0
        %v1009 = vadd.f32 0.0, %v1008
        %v1010 = vpop.f32.mrb[0].mxu0
        %v1011 = vadd.f32 0.0, %v1010
        %v1012 = vpop.f32.mrb[0].mxu0
        %v1013 = vadd.f32 0.0, %v1012
        %v1014 = vpop.f32.mrb[0].mxu0
        %v1015 = vadd.f32 0.0, %v1014
        %1016 = vmatprep.mubr.bf16.mxu0 0
        %1017 = vmatmul.mubr.bf16.gmra.mrb[0].mxu0 %v824
        %v1018 = vpop.f32.mrb[0].mxu0
        %v1019 = vadd.f32 0.0, %v1018
        %v1020 = vpop.f32.mrb[0].mxu0
        %v1021 = vadd.f32 0.0, %v1020
        %v1022 = vpop.f32.mrb[0].mxu0
        %v1023 = vadd.f32 0.0, %v1022
        %v1024 = vpop.f32.mrb[0].mxu0
        %v1025 = vadd.f32 0.0, %v1024
        %1026 = vdwg.mxu0
        %v1027 = vsub.f32 %v956, %v1011
        %v1028 = vsub.f32 %v960, %v1015
        %v1029 = vsub.f32 %v966, %v1021
        %v1030 = vsub.f32 %v970, %v1025
        %v1031 = vpack.c.bf16 %v1028, %v1027
        %v1032 = vpack.c.bf16 %v1030, %v1029
        %v1033 = vadd.f32 %v958, %v1009
        %v1034 = vadd.f32 %v962, %v1013
        %v1035 = vadd.f32 %v968, %v1019
        %v1036 = vadd.f32 %v972, %v1023
        %v1037 = vpack.c.bf16 %v1034, %v1033
        %v1038 = vpack.c.bf16 %v1036, %v1035
        %v1039 = vld [vmem:[%s6] sm:$0xf]
        %v1040 = vld [vmem:[%s6 + $0x4] sm:$0xf]
        %v1041 = vld [vmem:[%s6 + $0x8] sm:$0xf]
        %v1042 = vld [vmem:[%s6 + $0xc] sm:$0xf]
        %v1043 = vld [vmem:[%s7] sm:$0xf]
        %v1044 = vld [vmem:[%s7 + $0x4] sm:$0xf]
        %v1045 = vld [vmem:[%s7 + $0x8] sm:$0xf]
        %v1046 = vld [vmem:[%s7 + $0xc] sm:$0xf]
        %v1051 = vunpack.c.l.b16 %v1043
        %v1052 = vunpack.c.l.b16 %v1044
        %v1053 = vunpack.c.l.b16 %v1045
        %v1054 = vunpack.c.l.b16 %v1046
        %v1055 = vpack.c.b16 %v1052, %v1051
        %v1056 = vpack.c.b16 %v1054, %v1053
        %v1058 = vsel %vm530, %v1055, 0
        %v1061 = vsel %vm530, %v1056, 0
        %1063 = vmatprep.subr.bf16.mxu0 0
        %1064 = vmatpush1.bf16.msra.mxu0 %v1037
        %1065 = vmatprep.subr.bf16.mxu0 0
        %1066 = vmatpush1.bf16.msra.mxu0 %v1038
        %1067 = vmatprep.subr.bf16.mxu0 0
        %1068 = vmatpush1.bf16.msra.mxu0 0
        %1069 = vmatprep.subr.bf16.mxu0 0
        %1070 = vmatpush1.bf16.msra.mxu0 0
        %1071 = vmatprep.subr.bf16.mxu0 0
        %1072 = vmatpush1.bf16.msra.mxu0 0
        %1073 = vmatprep.subr.bf16.mxu0 0
        %1074 = vmatpush1.bf16.msra.mxu0 0
        %1075 = vmatprep.subr.bf16.mxu0 0
        %1076 = vmatpush1.bf16.msra.mxu0 0
        %1077 = vmatprep.subr.bf16.mxu0 0
        %1078 = vmatpush1.bf16.msra.mxu0 0
        %1079 = vmatprep.subr.bf16.mxu0 0
        %1080 = vmatpush1.bf16.msra.mxu0 0
        %1081 = vmatprep.subr.bf16.mxu0 0
        %1082 = vmatpush1.bf16.msra.mxu0 0
        %1083 = vmatprep.subr.bf16.mxu0 0
        %1084 = vmatpush1.bf16.msra.mxu0 0
        %1085 = vmatprep.subr.bf16.mxu0 0
        %1086 = vmatpush1.bf16.msra.mxu0 0
        %1087 = vmatprep.subr.bf16.mxu0 0
        %1088 = vmatpush1.bf16.msra.mxu0 0
        %1089 = vmatprep.subr.bf16.mxu0 0
        %1090 = vmatpush1.bf16.msra.mxu0 0
        %1091 = vmatprep.subr.bf16.mxu0 0
        %1092 = vmatpush1.bf16.msra.mxu0 0
        %1093 = vmatprep.subr.bf16.mxu0 0
        %1094 = vmatpush1.bf16.msra.mxu0 0
        %1095 = vmatprep.mubr.bf16.mxu0 0
        %1096 = vmatmul.mubr.bf16.gmra.mrb[0].mxu0 %v1058
        %v1097 = vpop.f32.mrb[0].mxu0
        %v1098 = vadd.f32 0.0, %v1097
        %v1099 = vpop.f32.mrb[0].mxu0
        %v1100 = vpop.f32.mrb[0].mxu0
        %v1101 = vadd.f32 0.0, %v1100
        %v1102 = vpop.f32.mrb[0].mxu0
        %1103 = vmatprep.mubr.bf16.mxu0 0
        %1104 = vmatmul.mubr.bf16.gmra.mrb[0].mxu0 %v1061
        %v1105 = vpop.f32.mrb[0].mxu0
        %v1106 = vadd.f32 0.0, %v1105
        %v1107 = vpop.f32.mrb[0].mxu0
        %v1108 = vpop.f32.mrb[0].mxu0
        %v1109 = vadd.f32 0.0, %v1108
        %v1110 = vpop.f32.mrb[0].mxu0
        %1111 = vdwg.mxu0
        %v1116 = vunpack.c.l.b16 %v1039
        %v1117 = vunpack.c.l.b16 %v1040
        %v1118 = vunpack.c.l.b16 %v1041
        %v1119 = vunpack.c.l.b16 %v1042
        %v1120 = vpack.c.b16 %v1117, %v1116
        %v1121 = vpack.c.b16 %v1119, %v1118
        %v1123 = vsel %vm530, %v1120, 0
        %v1126 = vsel %vm530, %v1121, 0
        %1128 = vmatprep.subr.bf16.mxu0 0
        %1129 = vmatpush1.bf16.msra.mxu0 %v1031
        %1130 = vmatprep.subr.bf16.mxu0 0
        %1131 = vmatpush1.bf16.msra.mxu0 %v1032
        %1132 = vmatprep.subr.bf16.mxu0 0
        %1133 = vmatpush1.bf16.msra.mxu0 0
        %1134 = vmatprep.subr.bf16.mxu0 0
        %1135 = vmatpush1.bf16.msra.mxu0 0
        %1136 = vmatprep.subr.bf16.mxu0 0
        %1137 = vmatpush1.bf16.msra.mxu0 0
        %1138 = vmatprep.subr.bf16.mxu0 0
        %1139 = vmatpush1.bf16.msra.mxu0 0
        %1140 = vmatprep.subr.bf16.mxu0 0
        %1141 = vmatpush1.bf16.msra.mxu0 0
        %1142 = vmatprep.subr.bf16.mxu0 0
        %1143 = vmatpush1.bf16.msra.mxu0 0
        %1144 = vmatprep.subr.bf16.mxu0 0
        %1145 = vmatpush1.bf16.msra.mxu0 0
        %1146 = vmatprep.subr.bf16.mxu0 0
        %1147 = vmatpush1.bf16.msra.mxu0 0
        %1148 = vmatprep.subr.bf16.mxu0 0
        %1149 = vmatpush1.bf16.msra.mxu0 0
        %1150 = vmatprep.subr.bf16.mxu0 0
        %1151 = vmatpush1.bf16.msra.mxu0 0
        %1152 = vmatprep.subr.bf16.mxu0 0
        %1153 = vmatpush1.bf16.msra.mxu0 0
        %1154 = vmatprep.subr.bf16.mxu0 0
        %1155 = vmatpush1.bf16.msra.mxu0 0
        %1156 = vmatprep.subr.bf16.mxu0 0
        %1157 = vmatpush1.bf16.msra.mxu0 0
        %1158 = vmatprep.subr.bf16.mxu0 0
        %1159 = vmatpush1.bf16.msra.mxu0 0
        %1160 = vmatprep.mubr.bf16.mxu0 0
        %1161 = vmatmul.mubr.bf16.gmra.mrb[0].mxu0 %v1123
        %v1162 = vpop.f32.mrb[0].mxu0
        %v1163 = vadd.f32 %v1098, %v1162
        %v1164 = vpop.f32.mrb[0].mxu0
        %v1165 = vpop.f32.mrb[0].mxu0
        %v1166 = vadd.f32 %v1101, %v1165
        %v1167 = vpop.f32.mrb[0].mxu0
        %1168 = vmatprep.mubr.bf16.mxu0 0
        %1169 = vmatmul.mubr.bf16.gmra.mrb[0].mxu0 %v1126
        %v1170 = vpop.f32.mrb[0].mxu0
        %v1171 = vadd.f32 %v1106, %v1170
        %v1172 = vpop.f32.mrb[0].mxu0
        %v1173 = vpop.f32.mrb[0].mxu0
        %v1174 = vadd.f32 %v1109, %v1173
        %v1175 = vpop.f32.mrb[0].mxu0
        %1176 = vdwg.mxu0
        %1177 = vst [vmem:[%s484] sm:$0xff] %v1163
        %1178 = vst [vmem:[%s484 + $0x8] sm:$0xff] %v1166
        %1179 = vst [vmem:[%s484 + $0x10] sm:$0xff] %v1171
        %1180 = vst [vmem:[%s484 + $0x18] sm:$0xff] %v1174
        %s1181 = sand.u32 %s210, 1
        %s1182 = sand.u32 %s210, 1
        %s1183 = smul.addr %s1182, 32
        %s1184 = scalar_lea.vmem [#allocation5], %s1183
        // Predicated region
        $region170: #{global_fourier_block.1} parent=156 // pred_check
          %p1185 = pneg %p220
        $region171: #{global_fourier_block.1} parent=156 // pred_check_branch
          %1187 = sbr.rel (%p1185) target = $region173
        $region172: #{global_fourier_block.1} parent=156 // pred_region
          %s1188 = smul.addr %s19, 8
          %s1189 = scalar_lea.vmem %s8, %s1188
          // Predicated region
          $region174: #{global_fourier_block.1} parent=172 // pred_check
            _
          $region175: #{global_fourier_block.1} parent=172 // pred_check_branch
            %1191 = sbr.rel (0) target = $region177
          $region176: #{global_fourier_block.1} parent=172 // pred_region
            // Predicated region
            $region178: #{global_fourier_block.1} parent=176 // pred_check
              _
            $region179: #{global_fourier_block.1} parent=176 // pred_check_branch
              %1193 = sbr.rel (0) target = $region181
            $region180: #{global_fourier_block.1} parent=176 // pred_region
              // Predicated region
              $region193: #{global_fourier_block.1} parent=180 // pred_check
                _
              $region194: #{global_fourier_block.1} parent=180 // pred_check_branch
                %1214 = sbr.rel (0) target = $region196
              $region195: #{global_fourier_block.1} parent=180 // pred_region
                loop: start=0, step=1, limit=1
                $region197: #{global_fourier_block.1} parent=195 // loop_pre_header
                  _
                $region198: #{global_fourier_block.1} parent=195 // loop_header
                  %s1216 = sphi 0, %s1220
                  %p1217 = scmp.ge.s32.totalorder %s1216, 1
                  %s1221 = sphi %s1184, %s1184
                  %s1222 = sphi %s1189, %s1189
                $region199: #{global_fourier_block.1} parent=195 // loop_header_branch
                  %1219 = sbr.rel (%p1217) target = $region203
                $region200: #{global_fourier_block.1} parent=195 // loop_body
                  %v1223 = vld [vmem:[%s1221] sm:$0xff]
                  %1224 = vst [vmem:[%s1222] sm:$0xff] %v1223
                  %v1225 = vld [vmem:[%s1221 + $0x8] sm:$0xff]
                  %1226 = vst [vmem:[%s1222 + $0x20] sm:$0xff] %v1225
                  %v1227 = vld [vmem:[%s1221 + $0x10] sm:$0xff]
                  %1228 = vst [vmem:[%s1222 + $0x40] sm:$0xff] %v1227
                  %v1229 = vld [vmem:[%s1221 + $0x18] sm:$0xff]
                  %1230 = vst [vmem:[%s1222 + $0x60] sm:$0xff] %v1229
                $region201: #{global_fourier_block.1} parent=195 // loop_footer
                  %s1220 = sadd.s32 1, %s1216
                $region202: #{global_fourier_block.1} parent=195 // loop_footer_branch
                  %1215 = sbr.rel target = $region198
                $region203: #{global_fourier_block.1} parent=195 // loop_exit
                  _
              $region196: #{global_fourier_block.1} parent=180 // pred_fallthru
                _
              // Predicated region
              $region204: #{global_fourier_block.1} parent=180 // pred_check
                _
              $region205: #{global_fourier_block.1} parent=180 // pred_check_branch
                %1232 = sbr.rel target = $region207
              $region206: #{global_fourier_block.1} parent=180 // pred_region
                _
              $region207: #{global_fourier_block.1} parent=180 // pred_fallthru
                _
            $region181: #{global_fourier_block.1} parent=176 // pred_fallthru
              _
            // Predicated region
            $region182: #{global_fourier_block.1} parent=176 // pred_check
              _
            $region183: #{global_fourier_block.1} parent=176 // pred_check_branch
              %1195 = sbr.rel target = $region185
            $region184: #{global_fourier_block.1} parent=176 // pred_region
              loop: start=0, step=1, limit=1
              $region186: #{global_fourier_block.1} parent=184 // loop_pre_header
                _
              $region187: #{global_fourier_block.1} parent=184 // loop_header
                %s1198 = sphi 0, %s1202
                %p1199 = scmp.ge.s32.totalorder %s1198, 1
                %s1203 = sphi %s1184, %s1184
                %s1204 = sphi %s1189, %s1189
              $region188: #{global_fourier_block.1} parent=184 // loop_header_branch
                %1201 = sbr.rel (%p1199) target = $region192
              $region189: #{global_fourier_block.1} parent=184 // loop_body
                %v1205 = vld [vmem:[%s1203] sm:$0xff]
                %1206 = vst [vmem:[%s1204] sm:$0xff] %v1205
                %v1207 = vld [vmem:[%s1203 + $0x8] sm:$0xff]
                %1208 = vst [vmem:[%s1204 + $0x20] sm:$0xff] %v1207
                %v1209 = vld [vmem:[%s1203 + $0x10] sm:$0xff]
                %1210 = vst [vmem:[%s1204 + $0x40] sm:$0xff] %v1209
                %v1211 = vld [vmem:[%s1203 + $0x18] sm:$0xff]
                %1212 = vst [vmem:[%s1204 + $0x60] sm:$0xff] %v1211
              $region190: #{global_fourier_block.1} parent=184 // loop_footer
                %s1202 = sadd.s32 1, %s1198
              $region191: #{global_fourier_block.1} parent=184 // loop_footer_branch
                %1197 = sbr.rel target = $region187
              $region192: #{global_fourier_block.1} parent=184 // loop_exit
                _
            $region185: #{global_fourier_block.1} parent=176 // pred_fallthru
              _
          $region177: #{global_fourier_block.1} parent=172 // pred_fallthru
            _
          %1233 = vnop
        $region173: #{global_fourier_block.1} parent=156 // pred_fallthru
          _
      $region157: #{global_fourier_block.1} parent=5 // pred_fallthru
        _
      %p1234 = scmp.le.s32.totalorder 2, %s14
      // Predicated region
      $region208: #{global_fourier_block.1} parent=5 // pred_check
        %p1235 = pneg %p1234
      $region209: #{global_fourier_block.1} parent=5 // pred_check_branch
        %1237 = sbr.rel (%p1235) target = $region211
      $region210: #{global_fourier_block.1} parent=5 // pred_region
        %s1238 = ssub.s32 %s14, 2
        // Predicated region
        $region212: #{global_fourier_block.1} parent=210 // pred_check
          %p1239 = pneg %p226
        $region213: #{global_fourier_block.1} parent=210 // pred_check_branch
          %1241 = sbr.rel (%p1239) target = $region215
        $region214: #{global_fourier_block.1} parent=210 // pred_region
          %s1242 = sand.u32 %s211, 1
          %s1243 = sand.u32 %s211, 1
          %s1244 = smul.addr %s1243, 32
          %s1245 = scalar_lea.vmem [#allocation5], %s1244
        $region215: #{global_fourier_block.1} parent=210 // pred_fallthru
          _
      $region211: #{global_fourier_block.1} parent=5 // pred_fallthru
        _
    $region6: #{global_fourier_block.1} parent=1 // loop_footer
      %s18 = sadd.s32 1, %s14
    $region7: #{global_fourier_block.1} parent=1 // loop_footer_branch
      %13 = sbr.rel target = $region3
    $region8: #{global_fourier_block.1} parent=1 // loop_exit
      _

</llo_original>
